<compile_context>
chip_gen: v6e
topology: v6e:2x2x1
jax: 0.10.0
libtpu: 0.0.40
codegen_flags: <defaults>
</compile_context>

<pallas_src>
import functools
import math

import jax
import jax.numpy as jnp
from jax.experimental import pallas as pl
from jax.experimental.pallas import tpu as pltpu


def _cdiv(a, b):
    return -(-a // b)


def _layer_norm(x, g, b, eps=1e-5):
    mu = jnp.mean(x, axis=-1, keepdims=True)
    var = jnp.mean(jnp.square(x - mu), axis=-1, keepdims=True)
    return (x - mu) * jax.lax.rsqrt(var + eps) * g + b


# ---------------------------------------------------------------------------
# Fused kernel: all transformer layers + masked sum-pool head, b_tile batch
# elements per grid step, weights fully resident in VMEM.
# ---------------------------------------------------------------------------
def _fused_encoder_kernel(x_ref, mask_ref,
                          wqkv_ref, bqkv_ref, wo_ref, bo_ref,
                          ln1g_ref, ln1b_ref,
                          w1_ref, b1_ref, w2_ref, b2_ref,
                          ln2g_ref, ln2b_ref,
                          lng_ref, lnb_ref, wh_ref, bh_ref,
                          o_ref, *, n_layers, n_heads, head_dim):
    B, M, D = x_ref.shape
    hd = head_dim
    Dinner = n_heads * hd
    bf16 = jnp.bfloat16

    x = x_ref[...]                               # (B, M, D) f32 residual stream
    mask = mask_ref[...]                         # (B, M) f32 key mask (1=valid, 0=pad)
    # additive key bias, computed/hoisted once; broadcasts over query rows
    key_bias = ((1.0 - mask) * jnp.float32(-1e9))[:, None, :]    # (B, 1, M)

    x2d = x.reshape(B * M, D)                    # rows = batch*seq -> fills MXU sublanes

    def layer_body(l, x2d):
        xb = x2d.astype(bf16)

        # ---- fused QKV projection: one wide MXU matmul.  The 1/sqrt(head_dim)
        # softmax scale is folded into Wq / bq at init time. ----
        qkv = (jnp.dot(xb, wqkv_ref[l], preferred_element_type=jnp.float32)
               + bqkv_ref[l])                                     # (B*M, 3*Dinner) f32

        # ---- multi-head attention (batched over B inside each head).
        # Per-head loop kept because Mosaic cannot lower the (0,2,1,3) transpose /
        # multi-batch dot_general a fully head-batched einsum needs; the head
        # concat is removed by accumulating per-head output projections. ----
        att = jnp.zeros((B * M, D), jnp.float32) + bo_ref[l]
        for h in range(n_heads):
            qh = qkv[:, h * hd:(h + 1) * hd].reshape(B, M, hd).astype(bf16)
            kh = qkv[:, Dinner + h * hd:Dinner + (h + 1) * hd].reshape(B, M, hd).astype(bf16)
            vh = qkv[:, 2 * Dinner + h * hd:2 * Dinner + (h + 1) * hd].reshape(B, M, hd).astype(bf16)

            s = jnp.einsum('bqd,bkd->bqk', qh, kh,
                           preferred_element_type=jnp.float32) + key_bias
            s = s - jnp.max(s, axis=-1, keepdims=True)
            p = jnp.exp(s)
            p = p * pl.reciprocal(jnp.sum(p, axis=-1, keepdims=True), approx=True)
            oh = jnp.einsum('bqk,bkd->bqd', p.astype(bf16), vh,
                            preferred_element_type=jnp.float32)   # (B, M, hd) f32
            att = att + jnp.dot(oh.reshape(B * M, hd).astype(bf16), wo_ref[l, h],
                                preferred_element_type=jnp.float32)

        # ---- post-LN residual block 1 ----
        x1 = _layer_norm(x2d + att, ln1g_ref[l], ln1b_ref[l])     # (B*M, D) f32

        # ---- position-wise feed-forward (GELU) ----
        h1 = (jnp.dot(x1.astype(bf16), w1_ref[l], preferred_element_type=jnp.float32)
              + b1_ref[l])
        h1 = jax.nn.gelu(h1)
        h2 = (jnp.dot(h1.astype(bf16), w2_ref[l], preferred_element_type=jnp.float32)
              + b2_ref[l])

        # ---- post-LN residual block 2 ----
        return _layer_norm(x1 + h2, ln2g_ref[l], ln2b_ref[l])     # (B*M, D) f32

    if n_layers <= 4:
        # shallow stacks: unroll (full LLO scheduler visibility)
        for l in range(n_layers):
            x2d = layer_body(l, x2d)
    else:
        # deep stacks: rolled loop with dynamic layer indexing keeps instruction
        # memory / vreg live ranges bounded
        x2d = jax.lax.fori_loop(0, n_layers, layer_body, x2d)

    # ---- head epilogue: masked sum-pool over edges + LayerNorm + Linear logits ----
    xf = x2d.reshape(B, M, D)
    pooled = jnp.sum(xf * mask[:, :, None], axis=1)               # (B, D)
    # padded batch rows pool to zeros; LayerNorm eps keeps them finite, and they are
    # sliced off in the wrapper.
    y = _layer_norm(pooled, lng_ref[...], lnb_ref[...])
    o_ref[...] = (jnp.dot(y, wh_ref[...], preferred_element_type=jnp.float32)
                  + bh_ref[...]).astype(o_ref.dtype)


def _pick_b_tile(bs, seq_len):
    """Batch-tile heuristic (MXU fill + v7x dual-core + sublane alignment)."""
    # Fill the MXU: target >= 256 activation rows (b_tile*seq) per grid step
    # (256-deep MXU on v6e/v7x; 128 rows already saturate v5e's 128x128 MXU).
    b_tile = max(1, min(bs, _cdiv(256, seq_len), 128))
    # v7x has 2 TensorCores: prefer >= 2 "parallel" grid steps so batch tiles can be
    # sharded across cores, as long as each step still feeds >= 128 rows.
    if b_tile >= bs and bs >= 2 and (bs // 2) * seq_len >= 128:
        b_tile = _cdiv(bs, 2)
    if b_tile < bs:
        b_tile = min(bs, _cdiv(b_tile, 8) * 8)   # keep (b_tile, M)/(b_tile, n_out) blocks sublane-aligned
    if b_tile >= bs:
        b_tile = bs                              # single step: block == full (padded) batch
    return b_tile


def encoder_forward(x, edge_mask, lp, hp, cfg, b_tile=None):
    """Run the full transformer stack + pooled head in one pallas_call."""
    bs, M, D = x.shape
    n_layers = cfg["n_layers"]
    n_heads = cfg["n_heads"]
    head_dim = cfg["head_dim"]
    Dinner = n_heads * head_dim
    pf = cfg["pf_dim"]
    n_out = hp["w"].shape[1]

    if b_tile is None:
        b_tile = _pick_b_tile(bs, M)
    pad = (-bs) % b_tile
    if pad:                                       # pad batch to a whole number of tiles
        x = jnp.pad(x, ((0, pad), (0, 0), (0, 0)))
        edge_mask = jnp.pad(edge_mask, ((0, pad), (0, 0)))
    bs_p = bs + pad

    weights = (lp["wqkv"], lp["bqkv"], lp["wo"], lp["bo"],
               lp["ln1_g"], lp["ln1_b"],
               lp["w1"], lp["b1"], lp["w2"], lp["b2"],
               lp["ln2_g"], lp["ln2_b"],
               hp["ln_g"], hp["ln_b"], hp["w"], hp["b"])

    # Grid-invariant weights: whole-array VMEM residency (single buffer, no
    # per-step double-buffered DMA of constant blocks).
    weight_spec = pl.BlockSpec(memory_space=pltpu.MemorySpace.VMEM)

    # Explicit scoped-VMEM budget: stacked weights + activation tiles + headroom,
    # clamped to [32 MiB, 64 MiB] (safe on v5e/v6e/v7x physical VMEM).
    weight_bytes = sum(int(a.size) * a.dtype.itemsize for a in weights)
    rows = b_tile * M
    act_bytes = 4 * rows * (3 * D + 3 * Dinner + pf) + 4 * b_tile * M * M
    vmem_limit = int(min(64 << 20, max(32 << 20, weight_bytes + 4 * act_bytes + (8 << 20))))

    kernel = functools.partial(_fused_encoder_kernel, n_layers=n_layers,
                               n_heads=n_heads, head_dim=head_dim)

    # TODO(synk): for production configs pad D / Dinner / pf (and ideally n_out) to
    # multiples of 128 so matmul operands and the output block are lane-dense.
    out = pl.pallas_call(
        kernel,
        out_shape=jax.ShapeDtypeStruct((bs_p, n_out), jnp.float32),
        grid=(bs_p // b_tile,),
        in_specs=[
            pl.BlockSpec((b_tile, M, D), lambda b: (b, 0, 0)),    # x, f32 residual stream
            pl.BlockSpec((b_tile, M), lambda b: (b, 0)),          # edge mask, f32
        ] + [weight_spec] * len(weights),
        out_specs=pl.BlockSpec((b_tile, n_out), lambda b: (b, 0)),
        compiler_params=pltpu.CompilerParams(
            dimension_semantics=("parallel",),
            vmem_limit_bytes=vmem_limit),
    )(x.astype(jnp.float32), edge_mask.astype(jnp.float32), *weights)
    return out[:bs]


# ---------------------------------------------------------------------------
# JAX glue: encoders (embedding sums), edge gather, full forward.
# ---------------------------------------------------------------------------
def forward(params, node_features, node_preprocess_feat, edge_index, edge_features,
            edge_mask, cfg):
    # PaddedAtomEncoder: sum of per-categorical-feature embeddings (row 0 = padding).
    atom_enc = sum(params["atom_emb"][i][node_features[..., i]]
                   for i in range(node_features.shape[-1]))
    node_encodings = jnp.concatenate([atom_enc, node_preprocess_feat], axis=2)

    # get_node_feature_pairs: gather node encodings at both edge endpoints.
    gather = jax.vmap(lambda enc, idx: enc[idx])
    x_1 = gather(node_encodings, edge_index[:, :, 0])
    x_2 = gather(node_encodings, edge_index[:, :, 1])

    # PaddedBondEncoder.
    x_3 = sum(params["bond_emb"][i][edge_features[..., i]]
              for i in range(edge_features.shape[-1]))

    x = jnp.concatenate([x_1, x_2, x_3], axis=2)     # (bs, num_edges, query_dim) f32

    # Fused transformer stack + masked sum-pool + LayerNorm + logits.
    return encoder_forward(x, edge_mask, params["layers"], params["head"], cfg)


def init_params(key, cfg):
    D = 2 * cfg["atom_emb_dim"] + 2 * cfg["node_preprocess_dim"] + cfg["bond_emb_dim"]
    H, hd = cfg["n_heads"], cfg["head_dim"]
    Dinner = H * hd
    pf = cfg["pf_dim"]
    L = cfg["n_layers"]
    keys = iter(jax.random.split(key, 1024))

    def nrm(shape, scale=0.05, dtype=jnp.float32):
        return (scale * jax.random.normal(next(keys), shape)).astype(dtype)

    atom_emb = [nrm((v, cfg["atom_emb_dim"])).at[0].set(0.0) for v in cfg["atom_vocab"]]
    bond_emb = [nrm((v, cfg["bond_emb_dim"])).at[0].set(0.0) for v in cfg["bond_vocab"]]

    def make_wqkv():
        # fused [Wq | Wk | Wv]; the 1/sqrt(head_dim) attention scale is folded into
        # the Q columns (bq is zero so it needs no scaling).  MXU weights in bf16.
        w = nrm((D, 3 * Dinner))
        w = w.at[:, :Dinner].multiply(1.0 / math.sqrt(hd))
        return w.astype(jnp.bfloat16)

    layers = dict(
        wqkv=jnp.stack([make_wqkv() for _ in range(L)], axis=0),
        bqkv=jnp.zeros((L, 1, 3 * Dinner), jnp.float32),
        # head-major output projection: (L, H, head_dim, D)
        wo=jnp.stack([nrm((H, hd, D), dtype=jnp.bfloat16) for _ in range(L)], axis=0),
        bo=jnp.zeros((L, 1, D), jnp.float32),
        ln1_g=jnp.ones((L, 1, D), jnp.float32),
        ln1_b=jnp.zeros((L, 1, D), jnp.float32),
        w1=jnp.stack([nrm((D, pf), dtype=jnp.bfloat16) for _ in range(L)], axis=0),
        b1=jnp.zeros((L, 1, pf), jnp.float32),
        w2=jnp.stack([nrm((pf, D), dtype=jnp.bfloat16) for _ in range(L)], axis=0),
        b2=jnp.zeros((L, 1, D), jnp.float32),
        ln2_g=jnp.ones((L, 1, D), jnp.float32),
        ln2_b=jnp.zeros((L, 1, D), jnp.float32),
    )

    head_p = dict(ln_g=jnp.ones((1, D), jnp.float32), ln_b=jnp.zeros((1, D), jnp.float32),
                  w=nrm((D, cfg["num_outputs"])),
                  b=jnp.zeros((1, cfg["num_outputs"]), jnp.float32))
    return dict(atom_emb=atom_emb, bond_emb=bond_emb, layers=layers, head=head_p)


if __name__ == "__main__":
    cfg = dict(atom_emb_dim=8, bond_emb_dim=8, node_preprocess_dim=4,
               n_layers=2, n_heads=2, head_dim=16, pf_dim=64, num_outputs=3,
               atom_vocab=(16, 16, 16), bond_vocab=(8, 8))
    # query_dim = 2*8 + 2*4 + 8 = 32

    params = init_params(jax.random.PRNGKey(0), cfg)

    bs, num_nodes, num_edges = 2, 16, 8
    k1, k2, k3, k4 = jax.random.split(jax.random.PRNGKey(0), 4)
    node_features = jax.random.randint(k1, (bs, num_nodes, len(cfg["atom_vocab"])), 1, 16)
    node_preprocess_feat = jax.random.normal(
        k2, (bs, num_nodes, cfg["node_preprocess_dim"]), jnp.float32)
    edge_index = jax.random.randint(k3, (bs, num_edges, 2), 0, num_nodes)
    edge_features = jax.random.randint(k4, (bs, num_edges, len(cfg["bond_vocab"])), 1, 8)
    edge_mask = jnp.array([[1, 1, 1, 1, 1, 1, 1, 1],
                           [1, 1, 1, 1, 1, 0, 0, 0]], jnp.float32)

    out = forward(params, node_features, node_preprocess_feat, edge_index,
                  edge_features, edge_mask, cfg)
    out = jax.block_until_ready(out)
    assert out.shape == (bs, cfg["num_outputs"]), out.shape
    assert bool(jnp.all(jnp.isfinite(out)))
    print("KERNEL_OK")
</pallas_src>

<mosaic_0001>
module attributes {stable_mosaic.version = 11 : i64} {
  func.func @_fused_encoder_kernel(%arg0: i32, %arg1: memref<2x8x32xf32, #tpu.memory_space<vmem>>, %arg2: memref<2x8xf32, #tpu.memory_space<vmem>>, %arg3: memref<2x32x96xbf16, #tpu.memory_space<vmem>>, %arg4: memref<2x1x96xf32, #tpu.memory_space<vmem>>, %arg5: memref<2x2x16x32xbf16, #tpu.memory_space<vmem>>, %arg6: memref<2x1x32xf32, #tpu.memory_space<vmem>>, %arg7: memref<2x1x32xf32, #tpu.memory_space<vmem>>, %arg8: memref<2x1x32xf32, #tpu.memory_space<vmem>>, %arg9: memref<2x32x64xbf16, #tpu.memory_space<vmem>>, %arg10: memref<2x1x64xf32, #tpu.memory_space<vmem>>, %arg11: memref<2x64x32xbf16, #tpu.memory_space<vmem>>, %arg12: memref<2x1x32xf32, #tpu.memory_space<vmem>>, %arg13: memref<2x1x32xf32, #tpu.memory_space<vmem>>, %arg14: memref<2x1x32xf32, #tpu.memory_space<vmem>>, %arg15: memref<1x32xf32, #tpu.memory_space<vmem>>, %arg16: memref<1x32xf32, #tpu.memory_space<vmem>>, %arg17: memref<32x3xf32, #tpu.memory_space<vmem>>, %arg18: memref<1x3xf32, #tpu.memory_space<vmem>>, %arg19: memref<2x3xf32, #tpu.memory_space<vmem>>) attributes {dimension_semantics = [#tpu.dimension_semantics<parallel>], iteration_bounds = array<i64: 1>, scalar_prefetch = 0 : i64, scratch_operands = 0 : i64, tpu.core_type = #tpu.core_type<tc>, window_params = [{transform_indices = @transform_0, window_bounds = array<i64: 2, 8, 32>}, {transform_indices = @transform_1, window_bounds = array<i64: 2, 8>}, {pipeline_mode = #tpu.pipeline_mode<synchronous>, transform_indices = @transform_2, window_bounds = array<i64: 2, 32, 96>}, {pipeline_mode = #tpu.pipeline_mode<synchronous>, transform_indices = @transform_3, window_bounds = array<i64: 2, 1, 96>}, {pipeline_mode = #tpu.pipeline_mode<synchronous>, transform_indices = @transform_4, window_bounds = array<i64: 2, 2, 16, 32>}, {pipeline_mode = #tpu.pipeline_mode<synchronous>, transform_indices = @transform_5, window_bounds = array<i64: 2, 1, 32>}, {pipeline_mode = #tpu.pipeline_mode<synchronous>, transform_indices = @transform_6, window_bounds = array<i64: 2, 1, 32>}, {pipeline_mode = #tpu.pipeline_mode<synchronous>, transform_indices = @transform_7, window_bounds = array<i64: 2, 1, 32>}, {pipeline_mode = #tpu.pipeline_mode<synchronous>, transform_indices = @transform_8, window_bounds = array<i64: 2, 32, 64>}, {pipeline_mode = #tpu.pipeline_mode<synchronous>, transform_indices = @transform_9, window_bounds = array<i64: 2, 1, 64>}, {pipeline_mode = #tpu.pipeline_mode<synchronous>, transform_indices = @transform_10, window_bounds = array<i64: 2, 64, 32>}, {pipeline_mode = #tpu.pipeline_mode<synchronous>, transform_indices = @transform_11, window_bounds = array<i64: 2, 1, 32>}, {pipeline_mode = #tpu.pipeline_mode<synchronous>, transform_indices = @transform_12, window_bounds = array<i64: 2, 1, 32>}, {pipeline_mode = #tpu.pipeline_mode<synchronous>, transform_indices = @transform_13, window_bounds = array<i64: 2, 1, 32>}, {pipeline_mode = #tpu.pipeline_mode<synchronous>, transform_indices = @transform_14, window_bounds = array<i64: 1, 32>}, {pipeline_mode = #tpu.pipeline_mode<synchronous>, transform_indices = @transform_15, window_bounds = array<i64: 1, 32>}, {pipeline_mode = #tpu.pipeline_mode<synchronous>, transform_indices = @transform_16, window_bounds = array<i64: 32, 3>}, {pipeline_mode = #tpu.pipeline_mode<synchronous>, transform_indices = @transform_17, window_bounds = array<i64: 1, 3>}, {transform_indices = @transform_18, window_bounds = array<i64: 2, 3>}]} {
    %c0 = arith.constant 0 : index
    %c0_0 = arith.constant 0 : index
    %c0_1 = arith.constant 0 : index
    %0 = vector.load %arg1[%c0, %c0_0, %c0_1] : memref<2x8x32xf32, #tpu.memory_space<vmem>>, vector<2x8x32xf32>
    %c0_2 = arith.constant 0 : index
    %c0_3 = arith.constant 0 : index
    %1 = vector.load %arg2[%c0_2, %c0_3] : memref<2x8xf32, #tpu.memory_space<vmem>>, vector<2x8xf32>
    %cst = arith.constant 1.000000e+00 : f32
    %2 = vector.broadcast %cst : f32 to vector<2x8xf32>
    %3 = arith.subf %2, %1 : vector<2x8xf32>
    %cst_4 = arith.constant -1.000000e+09 : f32
    %4 = vector.broadcast %cst_4 : f32 to vector<2x8xf32>
    %5 = arith.mulf %3, %4 : vector<2x8xf32>
    %6 = vector.shape_cast %5 : vector<2x8xf32> to vector<2x1x8xf32>
    %7 = vector.shape_cast %0 : vector<2x8x32xf32> to vector<16x32xf32>
    %8 = arith.truncf %7 : vector<16x32xf32> to vector<16x32xbf16>
    %c0_5 = arith.constant 0 : index
    %c0_6 = arith.constant 0 : index
    %c0_7 = arith.constant 0 : index
    %9 = vector.load %arg3[%c0_5, %c0_6, %c0_7] : memref<2x32x96xbf16, #tpu.memory_space<vmem>>, vector<1x32x96xbf16>
    %10 = vector.shape_cast %9 : vector<1x32x96xbf16> to vector<32x96xbf16>
    %cst_8 = arith.constant dense<0.000000e+00> : vector<16x96xf32>
    %11 = tpu.matmul %8, %10, %cst_8 {dimension_numbers = #tpu.dot_dimension_numbers<[1], [0], [0], [1], [0, 0, 1, 1], [], []>} : vector<16x32xbf16>, vector<32x96xbf16>, vector<16x96xf32> -> vector<16x96xf32>
    %c0_9 = arith.constant 0 : index
    %c0_10 = arith.constant 0 : index
    %c0_11 = arith.constant 0 : index
    %12 = vector.load %arg4[%c0_9, %c0_10, %c0_11] : memref<2x1x96xf32, #tpu.memory_space<vmem>>, vector<1x1x96xf32>
    %13 = vector.shape_cast %12 : vector<1x1x96xf32> to vector<1x96xf32>
    %14 = vector.broadcast %13 : vector<1x96xf32> to vector<16x96xf32>
    %15 = arith.addf %11, %14 : vector<16x96xf32>
    %cst_12 = arith.constant 0.000000e+00 : f32
    %16 = vector.broadcast %cst_12 : f32 to vector<16x32xf32>
    %c0_13 = arith.constant 0 : index
    %c0_14 = arith.constant 0 : index
    %c0_15 = arith.constant 0 : index
    %17 = vector.load %arg6[%c0_13, %c0_14, %c0_15] : memref<2x1x32xf32, #tpu.memory_space<vmem>>, vector<1x1x32xf32>
    %18 = vector.shape_cast %17 : vector<1x1x32xf32> to vector<1x32xf32>
    %19 = vector.broadcast %18 : vector<1x32xf32> to vector<16x32xf32>
    %20 = arith.addf %16, %19 : vector<16x32xf32>
    %21 = vector.extract_strided_slice %15 {offsets = [0, 0], sizes = [16, 16], strides = [1, 1]} : vector<16x96xf32> to vector<16x16xf32>
    %22 = vector.shape_cast %21 : vector<16x16xf32> to vector<2x8x16xf32>
    %23 = arith.truncf %22 : vector<2x8x16xf32> to vector<2x8x16xbf16>
    %24 = vector.extract_strided_slice %15 {offsets = [0, 32], sizes = [16, 16], strides = [1, 1]} : vector<16x96xf32> to vector<16x16xf32>
    %25 = vector.shape_cast %24 : vector<16x16xf32> to vector<2x8x16xf32>
    %26 = arith.truncf %25 : vector<2x8x16xf32> to vector<2x8x16xbf16>
    %27 = vector.extract_strided_slice %15 {offsets = [0, 64], sizes = [16, 16], strides = [1, 1]} : vector<16x96xf32> to vector<16x16xf32>
    %28 = vector.shape_cast %27 : vector<16x16xf32> to vector<2x8x16xf32>
    %29 = arith.truncf %28 : vector<2x8x16xf32> to vector<2x8x16xbf16>
    "tpu.trace_start"() <{level = 10 : i32, message = "bqd,bkd->bqk"}> : () -> ()
    %cst_16 = arith.constant dense<0.000000e+00> : vector<2x8x8xf32>
    %30 = tpu.matmul %23, %26, %cst_16 {dimension_numbers = #tpu.dot_dimension_numbers<[2], [2], [1], [1], [0, 0, 0, 1, 1, 1], [0], [0]>} : vector<2x8x16xbf16>, vector<2x8x16xbf16>, vector<2x8x8xf32> -> vector<2x8x8xf32>
    "tpu.trace_stop"() : () -> ()
    %31 = vector.broadcast %6 : vector<2x1x8xf32> to vector<2x8x8xf32>
    %32 = arith.addf %30, %31 : vector<2x8x8xf32>
    %cst_17 = arith.constant dense<0xFF800000> : vector<2x8xf32>
    %33 = vector.multi_reduction <maximumf>, %32, %cst_17 [2] : vector<2x8x8xf32> to vector<2x8xf32>
    %34 = vector.shape_cast %33 : vector<2x8xf32> to vector<2x8x1xf32>
    %35 = vector.broadcast %34 : vector<2x8x1xf32> to vector<2x8x8xf32>
    %36 = arith.subf %32, %35 : vector<2x8x8xf32>
    %37 = math.exp %36 : vector<2x8x8xf32>
    %cst_18 = arith.constant dense<0.000000e+00> : vector<2x8xf32>
    %38 = vector.multi_reduction <add>, %37, %cst_18 [2] : vector<2x8x8xf32> to vector<2x8xf32>
    %39 = vector.shape_cast %38 : vector<2x8xf32> to vector<2x8x1xf32>
    %40 = tpu.reciprocal %39 {approx = true} : vector<2x8x1xf32> -> vector<2x8x1xf32>
    %41 = vector.broadcast %40 : vector<2x8x1xf32> to vector<2x8x8xf32>
    %42 = arith.mulf %37, %41 : vector<2x8x8xf32>
    %43 = arith.truncf %42 : vector<2x8x8xf32> to vector<2x8x8xbf16>
    "tpu.trace_start"() <{level = 10 : i32, message = "bqk,bkd->bqd"}> : () -> ()
    %cst_19 = arith.constant dense<0.000000e+00> : vector<2x8x16xf32>
    %44 = tpu.matmul %43, %29, %cst_19 {dimension_numbers = #tpu.dot_dimension_numbers<[2], [1], [1], [2], [0, 0, 0, 1, 1, 2], [0], [0]>} : vector<2x8x8xbf16>, vector<2x8x16xbf16>, vector<2x8x16xf32> -> vector<2x8x16xf32>
    "tpu.trace_stop"() : () -> ()
    %45 = vector.shape_cast %44 : vector<2x8x16xf32> to vector<16x16xf32>
    %46 = arith.truncf %45 : vector<16x16xf32> to vector<16x16xbf16>
    %c0_20 = arith.constant 0 : index
    %c0_21 = arith.constant 0 : index
    %c0_22 = arith.constant 0 : index
    %c0_23 = arith.constant 0 : index
    %47 = vector.load %arg5[%c0_20, %c0_21, %c0_22, %c0_23] : memref<2x2x16x32xbf16, #tpu.memory_space<vmem>>, vector<1x1x16x32xbf16>
    %48 = vector.shape_cast %47 : vector<1x1x16x32xbf16> to vector<16x32xbf16>
    %cst_24 = arith.constant dense<0.000000e+00> : vector<16x32xf32>
    %49 = tpu.matmul %46, %48, %cst_24 {dimension_numbers = #tpu.dot_dimension_numbers<[1], [0], [0], [1], [0, 0, 1, 1], [], []>} : vector<16x16xbf16>, vector<16x32xbf16>, vector<16x32xf32> -> vector<16x32xf32>
    %50 = arith.addf %20, %49 : vector<16x32xf32>
    %51 = vector.extract_strided_slice %15 {offsets = [0, 16], sizes = [16, 16], strides = [1, 1]} : vector<16x96xf32> to vector<16x16xf32>
    %52 = vector.shape_cast %51 : vector<16x16xf32> to vector<2x8x16xf32>
    %53 = arith.truncf %52 : vector<2x8x16xf32> to vector<2x8x16xbf16>
    %54 = vector.extract_strided_slice %15 {offsets = [0, 48], sizes = [16, 16], strides = [1, 1]} : vector<16x96xf32> to vector<16x16xf32>
    %55 = vector.shape_cast %54 : vector<16x16xf32> to vector<2x8x16xf32>
    %56 = arith.truncf %55 : vector<2x8x16xf32> to vector<2x8x16xbf16>
    %57 = vector.extract_strided_slice %15 {offsets = [0, 80], sizes = [16, 16], strides = [1, 1]} : vector<16x96xf32> to vector<16x16xf32>
    %58 = vector.shape_cast %57 : vector<16x16xf32> to vector<2x8x16xf32>
    %59 = arith.truncf %58 : vector<2x8x16xf32> to vector<2x8x16xbf16>
    "tpu.trace_start"() <{level = 10 : i32, message = "bqd,bkd->bqk"}> : () -> ()
    %cst_25 = arith.constant dense<0.000000e+00> : vector<2x8x8xf32>
    %60 = tpu.matmul %53, %56, %cst_25 {dimension_numbers = #tpu.dot_dimension_numbers<[2], [2], [1], [1], [0, 0, 0, 1, 1, 1], [0], [0]>} : vector<2x8x16xbf16>, vector<2x8x16xbf16>, vector<2x8x8xf32> -> vector<2x8x8xf32>
    "tpu.trace_stop"() : () -> ()
    %61 = vector.broadcast %6 : vector<2x1x8xf32> to vector<2x8x8xf32>
    %62 = arith.addf %60, %61 : vector<2x8x8xf32>
    %cst_26 = arith.constant dense<0xFF800000> : vector<2x8xf32>
    %63 = vector.multi_reduction <maximumf>, %62, %cst_26 [2] : vector<2x8x8xf32> to vector<2x8xf32>
    %64 = vector.shape_cast %63 : vector<2x8xf32> to vector<2x8x1xf32>
    %65 = vector.broadcast %64 : vector<2x8x1xf32> to vector<2x8x8xf32>
    %66 = arith.subf %62, %65 : vector<2x8x8xf32>
    %67 = math.exp %66 : vector<2x8x8xf32>
    %cst_27 = arith.constant dense<0.000000e+00> : vector<2x8xf32>
    %68 = vector.multi_reduction <add>, %67, %cst_27 [2] : vector<2x8x8xf32> to vector<2x8xf32>
    %69 = vector.shape_cast %68 : vector<2x8xf32> to vector<2x8x1xf32>
    %70 = tpu.reciprocal %69 {approx = true} : vector<2x8x1xf32> -> vector<2x8x1xf32>
    %71 = vector.broadcast %70 : vector<2x8x1xf32> to vector<2x8x8xf32>
    %72 = arith.mulf %67, %71 : vector<2x8x8xf32>
    %73 = arith.truncf %72 : vector<2x8x8xf32> to vector<2x8x8xbf16>
    "tpu.trace_start"() <{level = 10 : i32, message = "bqk,bkd->bqd"}> : () -> ()
    %cst_28 = arith.constant dense<0.000000e+00> : vector<2x8x16xf32>
    %74 = tpu.matmul %73, %59, %cst_28 {dimension_numbers = #tpu.dot_dimension_numbers<[2], [1], [1], [2], [0, 0, 0, 1, 1, 2], [0], [0]>} : vector<2x8x8xbf16>, vector<2x8x16xbf16>, vector<2x8x16xf32> -> vector<2x8x16xf32>
    "tpu.trace_stop"() : () -> ()
    %75 = vector.shape_cast %74 : vector<2x8x16xf32> to vector<16x16xf32>
    %76 = arith.truncf %75 : vector<16x16xf32> to vector<16x16xbf16>
    %c0_29 = arith.constant 0 : index
    %c1 = arith.constant 1 : index
    %c0_30 = arith.constant 0 : index
    %c0_31 = arith.constant 0 : index
    %77 = vector.load %arg5[%c0_29, %c1, %c0_30, %c0_31] : memref<2x2x16x32xbf16, #tpu.memory_space<vmem>>, vector<1x1x16x32xbf16>
    %78 = vector.shape_cast %77 : vector<1x1x16x32xbf16> to vector<16x32xbf16>
    %cst_32 = arith.constant dense<0.000000e+00> : vector<16x32xf32>
    %79 = tpu.matmul %76, %78, %cst_32 {dimension_numbers = #tpu.dot_dimension_numbers<[1], [0], [0], [1], [0, 0, 1, 1], [], []>} : vector<16x16xbf16>, vector<16x32xbf16>, vector<16x32xf32> -> vector<16x32xf32>
    %80 = arith.addf %50, %79 : vector<16x32xf32>
    %81 = arith.addf %7, %80 : vector<16x32xf32>
    %c0_33 = arith.constant 0 : index
    %c0_34 = arith.constant 0 : index
    %c0_35 = arith.constant 0 : index
    %82 = vector.load %arg7[%c0_33, %c0_34, %c0_35] : memref<2x1x32xf32, #tpu.memory_space<vmem>>, vector<1x1x32xf32>
    %83 = vector.shape_cast %82 : vector<1x1x32xf32> to vector<1x32xf32>
    %c0_36 = arith.constant 0 : index
    %c0_37 = arith.constant 0 : index
    %c0_38 = arith.constant 0 : index
    %84 = vector.load %arg8[%c0_36, %c0_37, %c0_38] : memref<2x1x32xf32, #tpu.memory_space<vmem>>, vector<1x1x32xf32>
    %85 = vector.shape_cast %84 : vector<1x1x32xf32> to vector<1x32xf32>
    %cst_39 = arith.constant dense<0.000000e+00> : vector<16xf32>
    %86 = vector.multi_reduction <add>, %81, %cst_39 [1] : vector<16x32xf32> to vector<16xf32>
    %87 = vector.shape_cast %86 : vector<16xf32> to vector<16x1xf32>
    %cst_40 = arith.constant 3.200000e+01 : f32
    %88 = vector.broadcast %cst_40 : f32 to vector<16x1xf32>
    %89 = arith.divf %87, %88 : vector<16x1xf32>
    %90 = vector.broadcast %89 : vector<16x1xf32> to vector<16x32xf32>
    %91 = arith.subf %81, %90 : vector<16x32xf32>
    %92 = arith.mulf %91, %91 : vector<16x32xf32>
    %cst_41 = arith.constant dense<0.000000e+00> : vector<16xf32>
    %93 = vector.multi_reduction <add>, %92, %cst_41 [1] : vector<16x32xf32> to vector<16xf32>
    %94 = vector.shape_cast %93 : vector<16xf32> to vector<16x1xf32>
    %cst_42 = arith.constant 3.200000e+01 : f32
    %95 = vector.broadcast %cst_42 : f32 to vector<16x1xf32>
    %96 = arith.divf %94, %95 : vector<16x1xf32>
    %97 = vector.broadcast %89 : vector<16x1xf32> to vector<16x32xf32>
    %98 = arith.subf %81, %97 : vector<16x32xf32>
    %cst_43 = arith.constant 9.99999974E-6 : f32
    %99 = vector.broadcast %cst_43 : f32 to vector<16x1xf32>
    %100 = arith.addf %96, %99 : vector<16x1xf32>
    %101 = math.rsqrt %100 : vector<16x1xf32>
    %102 = vector.broadcast %101 : vector<16x1xf32> to vector<16x32xf32>
    %103 = arith.mulf %98, %102 : vector<16x32xf32>
    %104 = vector.broadcast %83 : vector<1x32xf32> to vector<16x32xf32>
    %105 = arith.mulf %103, %104 : vector<16x32xf32>
    %106 = vector.broadcast %85 : vector<1x32xf32> to vector<16x32xf32>
    %107 = arith.addf %105, %106 : vector<16x32xf32>
    %108 = arith.truncf %107 : vector<16x32xf32> to vector<16x32xbf16>
    %c0_44 = arith.constant 0 : index
    %c0_45 = arith.constant 0 : index
    %c0_46 = arith.constant 0 : index
    %109 = vector.load %arg9[%c0_44, %c0_45, %c0_46] : memref<2x32x64xbf16, #tpu.memory_space<vmem>>, vector<1x32x64xbf16>
    %110 = vector.shape_cast %109 : vector<1x32x64xbf16> to vector<32x64xbf16>
    %cst_47 = arith.constant dense<0.000000e+00> : vector<16x64xf32>
    %111 = tpu.matmul %108, %110, %cst_47 {dimension_numbers = #tpu.dot_dimension_numbers<[1], [0], [0], [1], [0, 0, 1, 1], [], []>} : vector<16x32xbf16>, vector<32x64xbf16>, vector<16x64xf32> -> vector<16x64xf32>
    %c0_48 = arith.constant 0 : index
    %c0_49 = arith.constant 0 : index
    %c0_50 = arith.constant 0 : index
    %112 = vector.load %arg10[%c0_48, %c0_49, %c0_50] : memref<2x1x64xf32, #tpu.memory_space<vmem>>, vector<1x1x64xf32>
    %113 = vector.shape_cast %112 : vector<1x1x64xf32> to vector<1x64xf32>
    %114 = vector.broadcast %113 : vector<1x64xf32> to vector<16x64xf32>
    %115 = arith.addf %111, %114 : vector<16x64xf32>
    %116 = arith.mulf %115, %115 : vector<16x64xf32>
    %117 = arith.mulf %115, %116 : vector<16x64xf32>
    %cst_51 = arith.constant 4.471500e-02 : f32
    %118 = vector.broadcast %cst_51 : f32 to vector<16x64xf32>
    %119 = arith.mulf %118, %117 : vector<16x64xf32>
    %120 = arith.addf %115, %119 : vector<16x64xf32>
    %cst_52 = arith.constant 0.797884583 : f32
    %121 = vector.broadcast %cst_52 : f32 to vector<16x64xf32>
    %122 = arith.mulf %121, %120 : vector<16x64xf32>
    %123 = math.tanh %122 : vector<16x64xf32>
    %cst_53 = arith.constant 1.000000e+00 : f32
    %124 = vector.broadcast %cst_53 : f32 to vector<16x64xf32>
    %125 = arith.addf %124, %123 : vector<16x64xf32>
    %cst_54 = arith.constant 5.000000e-01 : f32
    %126 = vector.broadcast %cst_54 : f32 to vector<16x64xf32>
    %127 = arith.mulf %126, %125 : vector<16x64xf32>
    %128 = arith.mulf %115, %127 : vector<16x64xf32>
    %129 = arith.truncf %128 : vector<16x64xf32> to vector<16x64xbf16>
    %c0_55 = arith.constant 0 : index
    %c0_56 = arith.constant 0 : index
    %c0_57 = arith.constant 0 : index
    %130 = vector.load %arg11[%c0_55, %c0_56, %c0_57] : memref<2x64x32xbf16, #tpu.memory_space<vmem>>, vector<1x64x32xbf16>
    %131 = vector.shape_cast %130 : vector<1x64x32xbf16> to vector<64x32xbf16>
    %cst_58 = arith.constant dense<0.000000e+00> : vector<16x32xf32>
    %132 = tpu.matmul %129, %131, %cst_58 {dimension_numbers = #tpu.dot_dimension_numbers<[1], [0], [0], [1], [0, 0, 1, 1], [], []>} : vector<16x64xbf16>, vector<64x32xbf16>, vector<16x32xf32> -> vector<16x32xf32>
    %c0_59 = arith.constant 0 : index
    %c0_60 = arith.constant 0 : index
    %c0_61 = arith.constant 0 : index
    %133 = vector.load %arg12[%c0_59, %c0_60, %c0_61] : memref<2x1x32xf32, #tpu.memory_space<vmem>>, vector<1x1x32xf32>
    %134 = vector.shape_cast %133 : vector<1x1x32xf32> to vector<1x32xf32>
    %135 = vector.broadcast %134 : vector<1x32xf32> to vector<16x32xf32>
    %136 = arith.addf %132, %135 : vector<16x32xf32>
    %137 = arith.addf %107, %136 : vector<16x32xf32>
    %c0_62 = arith.constant 0 : index
    %c0_63 = arith.constant 0 : index
    %c0_64 = arith.constant 0 : index
    %138 = vector.load %arg13[%c0_62, %c0_63, %c0_64] : memref<2x1x32xf32, #tpu.memory_space<vmem>>, vector<1x1x32xf32>
    %139 = vector.shape_cast %138 : vector<1x1x32xf32> to vector<1x32xf32>
    %c0_65 = arith.constant 0 : index
    %c0_66 = arith.constant 0 : index
    %c0_67 = arith.constant 0 : index
    %140 = vector.load %arg14[%c0_65, %c0_66, %c0_67] : memref<2x1x32xf32, #tpu.memory_space<vmem>>, vector<1x1x32xf32>
    %141 = vector.shape_cast %140 : vector<1x1x32xf32> to vector<1x32xf32>
    %cst_68 = arith.constant dense<0.000000e+00> : vector<16xf32>
    %142 = vector.multi_reduction <add>, %137, %cst_68 [1] : vector<16x32xf32> to vector<16xf32>
    %143 = vector.shape_cast %142 : vector<16xf32> to vector<16x1xf32>
    %cst_69 = arith.constant 3.200000e+01 : f32
    %144 = vector.broadcast %cst_69 : f32 to vector<16x1xf32>
    %145 = arith.divf %143, %144 : vector<16x1xf32>
    %146 = vector.broadcast %145 : vector<16x1xf32> to vector<16x32xf32>
    %147 = arith.subf %137, %146 : vector<16x32xf32>
    %148 = arith.mulf %147, %147 : vector<16x32xf32>
    %cst_70 = arith.constant dense<0.000000e+00> : vector<16xf32>
    %149 = vector.multi_reduction <add>, %148, %cst_70 [1] : vector<16x32xf32> to vector<16xf32>
    %150 = vector.shape_cast %149 : vector<16xf32> to vector<16x1xf32>
    %cst_71 = arith.constant 3.200000e+01 : f32
    %151 = vector.broadcast %cst_71 : f32 to vector<16x1xf32>
    %152 = arith.divf %150, %151 : vector<16x1xf32>
    %153 = vector.broadcast %145 : vector<16x1xf32> to vector<16x32xf32>
    %154 = arith.subf %137, %153 : vector<16x32xf32>
    %cst_72 = arith.constant 9.99999974E-6 : f32
    %155 = vector.broadcast %cst_72 : f32 to vector<16x1xf32>
    %156 = arith.addf %152, %155 : vector<16x1xf32>
    %157 = math.rsqrt %156 : vector<16x1xf32>
    %158 = vector.broadcast %157 : vector<16x1xf32> to vector<16x32xf32>
    %159 = arith.mulf %154, %158 : vector<16x32xf32>
    %160 = vector.broadcast %139 : vector<1x32xf32> to vector<16x32xf32>
    %161 = arith.mulf %159, %160 : vector<16x32xf32>
    %162 = vector.broadcast %141 : vector<1x32xf32> to vector<16x32xf32>
    %163 = arith.addf %161, %162 : vector<16x32xf32>
    %164 = arith.truncf %163 : vector<16x32xf32> to vector<16x32xbf16>
    %c1_73 = arith.constant 1 : index
    %c0_74 = arith.constant 0 : index
    %c0_75 = arith.constant 0 : index
    %165 = vector.load %arg3[%c1_73, %c0_74, %c0_75] : memref<2x32x96xbf16, #tpu.memory_space<vmem>>, vector<1x32x96xbf16>
    %166 = vector.shape_cast %165 : vector<1x32x96xbf16> to vector<32x96xbf16>
    %cst_76 = arith.constant dense<0.000000e+00> : vector<16x96xf32>
    %167 = tpu.matmul %164, %166, %cst_76 {dimension_numbers = #tpu.dot_dimension_numbers<[1], [0], [0], [1], [0, 0, 1, 1], [], []>} : vector<16x32xbf16>, vector<32x96xbf16>, vector<16x96xf32> -> vector<16x96xf32>
    %c1_77 = arith.constant 1 : index
    %c0_78 = arith.constant 0 : index
    %c0_79 = arith.constant 0 : index
    %168 = vector.load %arg4[%c1_77, %c0_78, %c0_79] : memref<2x1x96xf32, #tpu.memory_space<vmem>>, vector<1x1x96xf32>
    %169 = vector.shape_cast %168 : vector<1x1x96xf32> to vector<1x96xf32>
    %170 = vector.broadcast %169 : vector<1x96xf32> to vector<16x96xf32>
    %171 = arith.addf %167, %170 : vector<16x96xf32>
    %cst_80 = arith.constant 0.000000e+00 : f32
    %172 = vector.broadcast %cst_80 : f32 to vector<16x32xf32>
    %c1_81 = arith.constant 1 : index
    %c0_82 = arith.constant 0 : index
    %c0_83 = arith.constant 0 : index
    %173 = vector.load %arg6[%c1_81, %c0_82, %c0_83] : memref<2x1x32xf32, #tpu.memory_space<vmem>>, vector<1x1x32xf32>
    %174 = vector.shape_cast %173 : vector<1x1x32xf32> to vector<1x32xf32>
    %175 = vector.broadcast %174 : vector<1x32xf32> to vector<16x32xf32>
    %176 = arith.addf %172, %175 : vector<16x32xf32>
    %177 = vector.extract_strided_slice %171 {offsets = [0, 0], sizes = [16, 16], strides = [1, 1]} : vector<16x96xf32> to vector<16x16xf32>
    %178 = vector.shape_cast %177 : vector<16x16xf32> to vector<2x8x16xf32>
    %179 = arith.truncf %178 : vector<2x8x16xf32> to vector<2x8x16xbf16>
    %180 = vector.extract_strided_slice %171 {offsets = [0, 32], sizes = [16, 16], strides = [1, 1]} : vector<16x96xf32> to vector<16x16xf32>
    %181 = vector.shape_cast %180 : vector<16x16xf32> to vector<2x8x16xf32>
    %182 = arith.truncf %181 : vector<2x8x16xf32> to vector<2x8x16xbf16>
    %183 = vector.extract_strided_slice %171 {offsets = [0, 64], sizes = [16, 16], strides = [1, 1]} : vector<16x96xf32> to vector<16x16xf32>
    %184 = vector.shape_cast %183 : vector<16x16xf32> to vector<2x8x16xf32>
    %185 = arith.truncf %184 : vector<2x8x16xf32> to vector<2x8x16xbf16>
    "tpu.trace_start"() <{level = 10 : i32, message = "bqd,bkd->bqk"}> : () -> ()
    %cst_84 = arith.constant dense<0.000000e+00> : vector<2x8x8xf32>
    %186 = tpu.matmul %179, %182, %cst_84 {dimension_numbers = #tpu.dot_dimension_numbers<[2], [2], [1], [1], [0, 0, 0, 1, 1, 1], [0], [0]>} : vector<2x8x16xbf16>, vector<2x8x16xbf16>, vector<2x8x8xf32> -> vector<2x8x8xf32>
    "tpu.trace_stop"() : () -> ()
    %187 = vector.broadcast %6 : vector<2x1x8xf32> to vector<2x8x8xf32>
    %188 = arith.addf %186, %187 : vector<2x8x8xf32>
    %cst_85 = arith.constant dense<0xFF800000> : vector<2x8xf32>
    %189 = vector.multi_reduction <maximumf>, %188, %cst_85 [2] : vector<2x8x8xf32> to vector<2x8xf32>
    %190 = vector.shape_cast %189 : vector<2x8xf32> to vector<2x8x1xf32>
    %191 = vector.broadcast %190 : vector<2x8x1xf32> to vector<2x8x8xf32>
    %192 = arith.subf %188, %191 : vector<2x8x8xf32>
    %193 = math.exp %192 : vector<2x8x8xf32>
    %cst_86 = arith.constant dense<0.000000e+00> : vector<2x8xf32>
    %194 = vector.multi_reduction <add>, %193, %cst_86 [2] : vector<2x8x8xf32> to vector<2x8xf32>
    %195 = vector.shape_cast %194 : vector<2x8xf32> to vector<2x8x1xf32>
    %196 = tpu.reciprocal %195 {approx = true} : vector<2x8x1xf32> -> vector<2x8x1xf32>
    %197 = vector.broadcast %196 : vector<2x8x1xf32> to vector<2x8x8xf32>
    %198 = arith.mulf %193, %197 : vector<2x8x8xf32>
    %199 = arith.truncf %198 : vector<2x8x8xf32> to vector<2x8x8xbf16>
    "tpu.trace_start"() <{level = 10 : i32, message = "bqk,bkd->bqd"}> : () -> ()
    %cst_87 = arith.constant dense<0.000000e+00> : vector<2x8x16xf32>
    %200 = tpu.matmul %199, %185, %cst_87 {dimension_numbers = #tpu.dot_dimension_numbers<[2], [1], [1], [2], [0, 0, 0, 1, 1, 2], [0], [0]>} : vector<2x8x8xbf16>, vector<2x8x16xbf16>, vector<2x8x16xf32> -> vector<2x8x16xf32>
    "tpu.trace_stop"() : () -> ()
    %201 = vector.shape_cast %200 : vector<2x8x16xf32> to vector<16x16xf32>
    %202 = arith.truncf %201 : vector<16x16xf32> to vector<16x16xbf16>
    %c1_88 = arith.constant 1 : index
    %c0_89 = arith.constant 0 : index
    %c0_90 = arith.constant 0 : index
    %c0_91 = arith.constant 0 : index
    %203 = vector.load %arg5[%c1_88, %c0_89, %c0_90, %c0_91] : memref<2x2x16x32xbf16, #tpu.memory_space<vmem>>, vector<1x1x16x32xbf16>
    %204 = vector.shape_cast %203 : vector<1x1x16x32xbf16> to vector<16x32xbf16>
    %cst_92 = arith.constant dense<0.000000e+00> : vector<16x32xf32>
    %205 = tpu.matmul %202, %204, %cst_92 {dimension_numbers = #tpu.dot_dimension_numbers<[1], [0], [0], [1], [0, 0, 1, 1], [], []>} : vector<16x16xbf16>, vector<16x32xbf16>, vector<16x32xf32> -> vector<16x32xf32>
    %206 = arith.addf %176, %205 : vector<16x32xf32>
    %207 = vector.extract_strided_slice %171 {offsets = [0, 16], sizes = [16, 16], strides = [1, 1]} : vector<16x96xf32> to vector<16x16xf32>
    %208 = vector.shape_cast %207 : vector<16x16xf32> to vector<2x8x16xf32>
    %209 = arith.truncf %208 : vector<2x8x16xf32> to vector<2x8x16xbf16>
    %210 = vector.extract_strided_slice %171 {offsets = [0, 48], sizes = [16, 16], strides = [1, 1]} : vector<16x96xf32> to vector<16x16xf32>
    %211 = vector.shape_cast %210 : vector<16x16xf32> to vector<2x8x16xf32>
    %212 = arith.truncf %211 : vector<2x8x16xf32> to vector<2x8x16xbf16>
    %213 = vector.extract_strided_slice %171 {offsets = [0, 80], sizes = [16, 16], strides = [1, 1]} : vector<16x96xf32> to vector<16x16xf32>
    %214 = vector.shape_cast %213 : vector<16x16xf32> to vector<2x8x16xf32>
    %215 = arith.truncf %214 : vector<2x8x16xf32> to vector<2x8x16xbf16>
    "tpu.trace_start"() <{level = 10 : i32, message = "bqd,bkd->bqk"}> : () -> ()
    %cst_93 = arith.constant dense<0.000000e+00> : vector<2x8x8xf32>
    %216 = tpu.matmul %209, %212, %cst_93 {dimension_numbers = #tpu.dot_dimension_numbers<[2], [2], [1], [1], [0, 0, 0, 1, 1, 1], [0], [0]>} : vector<2x8x16xbf16>, vector<2x8x16xbf16>, vector<2x8x8xf32> -> vector<2x8x8xf32>
    "tpu.trace_stop"() : () -> ()
    %217 = vector.broadcast %6 : vector<2x1x8xf32> to vector<2x8x8xf32>
    %218 = arith.addf %216, %217 : vector<2x8x8xf32>
    %cst_94 = arith.constant dense<0xFF800000> : vector<2x8xf32>
    %219 = vector.multi_reduction <maximumf>, %218, %cst_94 [2] : vector<2x8x8xf32> to vector<2x8xf32>
    %220 = vector.shape_cast %219 : vector<2x8xf32> to vector<2x8x1xf32>
    %221 = vector.broadcast %220 : vector<2x8x1xf32> to vector<2x8x8xf32>
    %222 = arith.subf %218, %221 : vector<2x8x8xf32>
    %223 = math.exp %222 : vector<2x8x8xf32>
    %cst_95 = arith.constant dense<0.000000e+00> : vector<2x8xf32>
    %224 = vector.multi_reduction <add>, %223, %cst_95 [2] : vector<2x8x8xf32> to vector<2x8xf32>
    %225 = vector.shape_cast %224 : vector<2x8xf32> to vector<2x8x1xf32>
    %226 = tpu.reciprocal %225 {approx = true} : vector<2x8x1xf32> -> vector<2x8x1xf32>
    %227 = vector.broadcast %226 : vector<2x8x1xf32> to vector<2x8x8xf32>
    %228 = arith.mulf %223, %227 : vector<2x8x8xf32>
    %229 = arith.truncf %228 : vector<2x8x8xf32> to vector<2x8x8xbf16>
    "tpu.trace_start"() <{level = 10 : i32, message = "bqk,bkd->bqd"}> : () -> ()
    %cst_96 = arith.constant dense<0.000000e+00> : vector<2x8x16xf32>
    %230 = tpu.matmul %229, %215, %cst_96 {dimension_numbers = #tpu.dot_dimension_numbers<[2], [1], [1], [2], [0, 0, 0, 1, 1, 2], [0], [0]>} : vector<2x8x8xbf16>, vector<2x8x16xbf16>, vector<2x8x16xf32> -> vector<2x8x16xf32>
    "tpu.trace_stop"() : () -> ()
    %231 = vector.shape_cast %230 : vector<2x8x16xf32> to vector<16x16xf32>
    %232 = arith.truncf %231 : vector<16x16xf32> to vector<16x16xbf16>
    %c1_97 = arith.constant 1 : index
    %c1_98 = arith.constant 1 : index
    %c0_99 = arith.constant 0 : index
    %c0_100 = arith.constant 0 : index
    %233 = vector.load %arg5[%c1_97, %c1_98, %c0_99, %c0_100] : memref<2x2x16x32xbf16, #tpu.memory_space<vmem>>, vector<1x1x16x32xbf16>
    %234 = vector.shape_cast %233 : vector<1x1x16x32xbf16> to vector<16x32xbf16>
    %cst_101 = arith.constant dense<0.000000e+00> : vector<16x32xf32>
    %235 = tpu.matmul %232, %234, %cst_101 {dimension_numbers = #tpu.dot_dimension_numbers<[1], [0], [0], [1], [0, 0, 1, 1], [], []>} : vector<16x16xbf16>, vector<16x32xbf16>, vector<16x32xf32> -> vector<16x32xf32>
    %236 = arith.addf %206, %235 : vector<16x32xf32>
    %237 = arith.addf %163, %236 : vector<16x32xf32>
    %c1_102 = arith.constant 1 : index
    %c0_103 = arith.constant 0 : index
    %c0_104 = arith.constant 0 : index
    %238 = vector.load %arg7[%c1_102, %c0_103, %c0_104] : memref<2x1x32xf32, #tpu.memory_space<vmem>>, vector<1x1x32xf32>
    %239 = vector.shape_cast %238 : vector<1x1x32xf32> to vector<1x32xf32>
    %c1_105 = arith.constant 1 : index
    %c0_106 = arith.constant 0 : index
    %c0_107 = arith.constant 0 : index
    %240 = vector.load %arg8[%c1_105, %c0_106, %c0_107] : memref<2x1x32xf32, #tpu.memory_space<vmem>>, vector<1x1x32xf32>
    %241 = vector.shape_cast %240 : vector<1x1x32xf32> to vector<1x32xf32>
    %cst_108 = arith.constant dense<0.000000e+00> : vector<16xf32>
    %242 = vector.multi_reduction <add>, %237, %cst_108 [1] : vector<16x32xf32> to vector<16xf32>
    %243 = vector.shape_cast %242 : vector<16xf32> to vector<16x1xf32>
    %cst_109 = arith.constant 3.200000e+01 : f32
    %244 = vector.broadcast %cst_109 : f32 to vector<16x1xf32>
    %245 = arith.divf %243, %244 : vector<16x1xf32>
    %246 = vector.broadcast %245 : vector<16x1xf32> to vector<16x32xf32>
    %247 = arith.subf %237, %246 : vector<16x32xf32>
    %248 = arith.mulf %247, %247 : vector<16x32xf32>
    %cst_110 = arith.constant dense<0.000000e+00> : vector<16xf32>
    %249 = vector.multi_reduction <add>, %248, %cst_110 [1] : vector<16x32xf32> to vector<16xf32>
    %250 = vector.shape_cast %249 : vector<16xf32> to vector<16x1xf32>
    %cst_111 = arith.constant 3.200000e+01 : f32
    %251 = vector.broadcast %cst_111 : f32 to vector<16x1xf32>
    %252 = arith.divf %250, %251 : vector<16x1xf32>
    %253 = vector.broadcast %245 : vector<16x1xf32> to vector<16x32xf32>
    %254 = arith.subf %237, %253 : vector<16x32xf32>
    %cst_112 = arith.constant 9.99999974E-6 : f32
    %255 = vector.broadcast %cst_112 : f32 to vector<16x1xf32>
    %256 = arith.addf %252, %255 : vector<16x1xf32>
    %257 = math.rsqrt %256 : vector<16x1xf32>
    %258 = vector.broadcast %257 : vector<16x1xf32> to vector<16x32xf32>
    %259 = arith.mulf %254, %258 : vector<16x32xf32>
    %260 = vector.broadcast %239 : vector<1x32xf32> to vector<16x32xf32>
    %261 = arith.mulf %259, %260 : vector<16x32xf32>
    %262 = vector.broadcast %241 : vector<1x32xf32> to vector<16x32xf32>
    %263 = arith.addf %261, %262 : vector<16x32xf32>
    %264 = arith.truncf %263 : vector<16x32xf32> to vector<16x32xbf16>
    %c1_113 = arith.constant 1 : index
    %c0_114 = arith.constant 0 : index
    %c0_115 = arith.constant 0 : index
    %265 = vector.load %arg9[%c1_113, %c0_114, %c0_115] : memref<2x32x64xbf16, #tpu.memory_space<vmem>>, vector<1x32x64xbf16>
    %266 = vector.shape_cast %265 : vector<1x32x64xbf16> to vector<32x64xbf16>
    %cst_116 = arith.constant dense<0.000000e+00> : vector<16x64xf32>
    %267 = tpu.matmul %264, %266, %cst_116 {dimension_numbers = #tpu.dot_dimension_numbers<[1], [0], [0], [1], [0, 0, 1, 1], [], []>} : vector<16x32xbf16>, vector<32x64xbf16>, vector<16x64xf32> -> vector<16x64xf32>
    %c1_117 = arith.constant 1 : index
    %c0_118 = arith.constant 0 : index
    %c0_119 = arith.constant 0 : index
    %268 = vector.load %arg10[%c1_117, %c0_118, %c0_119] : memref<2x1x64xf32, #tpu.memory_space<vmem>>, vector<1x1x64xf32>
    %269 = vector.shape_cast %268 : vector<1x1x64xf32> to vector<1x64xf32>
    %270 = vector.broadcast %269 : vector<1x64xf32> to vector<16x64xf32>
    %271 = arith.addf %267, %270 : vector<16x64xf32>
    %272 = arith.mulf %271, %271 : vector<16x64xf32>
    %273 = arith.mulf %271, %272 : vector<16x64xf32>
    %cst_120 = arith.constant 4.471500e-02 : f32
    %274 = vector.broadcast %cst_120 : f32 to vector<16x64xf32>
    %275 = arith.mulf %274, %273 : vector<16x64xf32>
    %276 = arith.addf %271, %275 : vector<16x64xf32>
    %cst_121 = arith.constant 0.797884583 : f32
    %277 = vector.broadcast %cst_121 : f32 to vector<16x64xf32>
    %278 = arith.mulf %277, %276 : vector<16x64xf32>
    %279 = math.tanh %278 : vector<16x64xf32>
    %cst_122 = arith.constant 1.000000e+00 : f32
    %280 = vector.broadcast %cst_122 : f32 to vector<16x64xf32>
    %281 = arith.addf %280, %279 : vector<16x64xf32>
    %cst_123 = arith.constant 5.000000e-01 : f32
    %282 = vector.broadcast %cst_123 : f32 to vector<16x64xf32>
    %283 = arith.mulf %282, %281 : vector<16x64xf32>
    %284 = arith.mulf %271, %283 : vector<16x64xf32>
    %285 = arith.truncf %284 : vector<16x64xf32> to vector<16x64xbf16>
    %c1_124 = arith.constant 1 : index
    %c0_125 = arith.constant 0 : index
    %c0_126 = arith.constant 0 : index
    %286 = vector.load %arg11[%c1_124, %c0_125, %c0_126] : memref<2x64x32xbf16, #tpu.memory_space<vmem>>, vector<1x64x32xbf16>
    %287 = vector.shape_cast %286 : vector<1x64x32xbf16> to vector<64x32xbf16>
    %cst_127 = arith.constant dense<0.000000e+00> : vector<16x32xf32>
    %288 = tpu.matmul %285, %287, %cst_127 {dimension_numbers = #tpu.dot_dimension_numbers<[1], [0], [0], [1], [0, 0, 1, 1], [], []>} : vector<16x64xbf16>, vector<64x32xbf16>, vector<16x32xf32> -> vector<16x32xf32>
    %c1_128 = arith.constant 1 : index
    %c0_129 = arith.constant 0 : index
    %c0_130 = arith.constant 0 : index
    %289 = vector.load %arg12[%c1_128, %c0_129, %c0_130] : memref<2x1x32xf32, #tpu.memory_space<vmem>>, vector<1x1x32xf32>
    %290 = vector.shape_cast %289 : vector<1x1x32xf32> to vector<1x32xf32>
    %291 = vector.broadcast %290 : vector<1x32xf32> to vector<16x32xf32>
    %292 = arith.addf %288, %291 : vector<16x32xf32>
    %293 = arith.addf %263, %292 : vector<16x32xf32>
    %c1_131 = arith.constant 1 : index
    %c0_132 = arith.constant 0 : index
    %c0_133 = arith.constant 0 : index
    %294 = vector.load %arg13[%c1_131, %c0_132, %c0_133] : memref<2x1x32xf32, #tpu.memory_space<vmem>>, vector<1x1x32xf32>
    %295 = vector.shape_cast %294 : vector<1x1x32xf32> to vector<1x32xf32>
    %c1_134 = arith.constant 1 : index
    %c0_135 = arith.constant 0 : index
    %c0_136 = arith.constant 0 : index
    %296 = vector.load %arg14[%c1_134, %c0_135, %c0_136] : memref<2x1x32xf32, #tpu.memory_space<vmem>>, vector<1x1x32xf32>
    %297 = vector.shape_cast %296 : vector<1x1x32xf32> to vector<1x32xf32>
    %cst_137 = arith.constant dense<0.000000e+00> : vector<16xf32>
    %298 = vector.multi_reduction <add>, %293, %cst_137 [1] : vector<16x32xf32> to vector<16xf32>
    %299 = vector.shape_cast %298 : vector<16xf32> to vector<16x1xf32>
    %cst_138 = arith.constant 3.200000e+01 : f32
    %300 = vector.broadcast %cst_138 : f32 to vector<16x1xf32>
    %301 = arith.divf %299, %300 : vector<16x1xf32>
    %302 = vector.broadcast %301 : vector<16x1xf32> to vector<16x32xf32>
    %303 = arith.subf %293, %302 : vector<16x32xf32>
    %304 = arith.mulf %303, %303 : vector<16x32xf32>
    %cst_139 = arith.constant dense<0.000000e+00> : vector<16xf32>
    %305 = vector.multi_reduction <add>, %304, %cst_139 [1] : vector<16x32xf32> to vector<16xf32>
    %306 = vector.shape_cast %305 : vector<16xf32> to vector<16x1xf32>
    %cst_140 = arith.constant 3.200000e+01 : f32
    %307 = vector.broadcast %cst_140 : f32 to vector<16x1xf32>
    %308 = arith.divf %306, %307 : vector<16x1xf32>
    %309 = vector.broadcast %301 : vector<16x1xf32> to vector<16x32xf32>
    %310 = arith.subf %293, %309 : vector<16x32xf32>
    %cst_141 = arith.constant 9.99999974E-6 : f32
    %311 = vector.broadcast %cst_141 : f32 to vector<16x1xf32>
    %312 = arith.addf %308, %311 : vector<16x1xf32>
    %313 = math.rsqrt %312 : vector<16x1xf32>
    %314 = vector.broadcast %313 : vector<16x1xf32> to vector<16x32xf32>
    %315 = arith.mulf %310, %314 : vector<16x32xf32>
    %316 = vector.broadcast %295 : vector<1x32xf32> to vector<16x32xf32>
    %317 = arith.mulf %315, %316 : vector<16x32xf32>
    %318 = vector.broadcast %297 : vector<1x32xf32> to vector<16x32xf32>
    %319 = arith.addf %317, %318 : vector<16x32xf32>
    %320 = vector.shape_cast %319 : vector<16x32xf32> to vector<2x8x32xf32>
    %321 = vector.shape_cast %1 : vector<2x8xf32> to vector<2x8x1xf32>
    %322 = vector.broadcast %321 : vector<2x8x1xf32> to vector<2x8x32xf32>
    %323 = arith.mulf %320, %322 : vector<2x8x32xf32>
    %cst_142 = arith.constant dense<0.000000e+00> : vector<2x32xf32>
    %324 = vector.multi_reduction <add>, %323, %cst_142 [1] : vector<2x8x32xf32> to vector<2x32xf32>
    %c0_143 = arith.constant 0 : index
    %c0_144 = arith.constant 0 : index
    %325 = vector.load %arg15[%c0_143, %c0_144] : memref<1x32xf32, #tpu.memory_space<vmem>>, vector<1x32xf32>
    %c0_145 = arith.constant 0 : index
    %c0_146 = arith.constant 0 : index
    %326 = vector.load %arg16[%c0_145, %c0_146] : memref<1x32xf32, #tpu.memory_space<vmem>>, vector<1x32xf32>
    %cst_147 = arith.constant dense<0.000000e+00> : vector<2xf32>
    %327 = vector.multi_reduction <add>, %324, %cst_147 [1] : vector<2x32xf32> to vector<2xf32>
    %328 = vector.shape_cast %327 : vector<2xf32> to vector<2x1xf32>
    %cst_148 = arith.constant 3.200000e+01 : f32
    %329 = vector.broadcast %cst_148 : f32 to vector<2x1xf32>
    %330 = arith.divf %328, %329 : vector<2x1xf32>
    %331 = vector.broadcast %330 : vector<2x1xf32> to vector<2x32xf32>
    %332 = arith.subf %324, %331 : vector<2x32xf32>
    %333 = arith.mulf %332, %332 : vector<2x32xf32>
    %cst_149 = arith.constant dense<0.000000e+00> : vector<2xf32>
    %334 = vector.multi_reduction <add>, %333, %cst_149 [1] : vector<2x32xf32> to vector<2xf32>
    %335 = vector.shape_cast %334 : vector<2xf32> to vector<2x1xf32>
    %cst_150 = arith.constant 3.200000e+01 : f32
    %336 = vector.broadcast %cst_150 : f32 to vector<2x1xf32>
    %337 = arith.divf %335, %336 : vector<2x1xf32>
    %338 = vector.broadcast %330 : vector<2x1xf32> to vector<2x32xf32>
    %339 = arith.subf %324, %338 : vector<2x32xf32>
    %cst_151 = arith.constant 9.99999974E-6 : f32
    %340 = vector.broadcast %cst_151 : f32 to vector<2x1xf32>
    %341 = arith.addf %337, %340 : vector<2x1xf32>
    %342 = math.rsqrt %341 : vector<2x1xf32>
    %343 = vector.broadcast %342 : vector<2x1xf32> to vector<2x32xf32>
    %344 = arith.mulf %339, %343 : vector<2x32xf32>
    %345 = vector.broadcast %325 : vector<1x32xf32> to vector<2x32xf32>
    %346 = arith.mulf %344, %345 : vector<2x32xf32>
    %347 = vector.broadcast %326 : vector<1x32xf32> to vector<2x32xf32>
    %348 = arith.addf %346, %347 : vector<2x32xf32>
    %c0_152 = arith.constant 0 : index
    %c0_153 = arith.constant 0 : index
    %349 = vector.load %arg17[%c0_152, %c0_153] : memref<32x3xf32, #tpu.memory_space<vmem>>, vector<32x3xf32>
    %cst_154 = arith.constant dense<0.000000e+00> : vector<2x3xf32>
    %350 = tpu.matmul %348, %349, %cst_154 {dimension_numbers = #tpu.dot_dimension_numbers<[1], [0], [0], [1], [0, 0, 1, 1], [], []>} : vector<2x32xf32>, vector<32x3xf32>, vector<2x3xf32> -> vector<2x3xf32>
    %c0_155 = arith.constant 0 : index
    %c0_156 = arith.constant 0 : index
    %351 = vector.load %arg18[%c0_155, %c0_156] : memref<1x3xf32, #tpu.memory_space<vmem>>, vector<1x3xf32>
    %352 = vector.broadcast %351 : vector<1x3xf32> to vector<2x3xf32>
    %353 = arith.addf %350, %352 : vector<2x3xf32>
    %c0_157 = arith.constant 0 : index
    %c0_158 = arith.constant 0 : index
    %354 = vector.load %arg19[%c0_157, %c0_158] : memref<2x3xf32, #tpu.memory_space<vmem>>, vector<2x3xf32>
    tpu.vector_store %arg19[%c0_157, %c0_158], %353 {strides = array<i32>} : memref<2x3xf32, #tpu.memory_space<vmem>>, vector<2x3xf32>,
    return
  }
  func.func @transform_0(%arg0: i32) -> (i32, i32, i32) {
    %c0_i32 = arith.constant 0 : i32
    %c0_i32_0 = arith.constant 0 : i32
    %c0_i32_1 = arith.constant 0 : i32
    return %arg0, %c0_i32, %c0_i32_0 : i32, i32, i32
  }
  func.func @transform_1(%arg0: i32) -> (i32, i32) {
    %c0_i32 = arith.constant 0 : i32
    %c0_i32_0 = arith.constant 0 : i32
    return %arg0, %c0_i32 : i32, i32
  }
  func.func @transform_2(%arg0: i32) -> (i32, i32, i32) {
    %c0_i32 = arith.constant 0 : i32
    %c0_i32_0 = arith.constant 0 : i32
    %c0_i32_1 = arith.constant 0 : i32
    %c0_i32_2 = arith.constant 0 : i32
    return %c0_i32, %c0_i32_0, %c0_i32_1 : i32, i32, i32
  }
  func.func @transform_3(%arg0: i32) -> (i32, i32, i32) {
    %c0_i32 = arith.constant 0 : i32
    %c0_i32_0 = arith.constant 0 : i32
    %c0_i32_1 = arith.constant 0 : i32
    %c0_i32_2 = arith.constant 0 : i32
    return %c0_i32, %c0_i32_0, %c0_i32_1 : i32, i32, i32
  }
  func.func @transform_4(%arg0: i32) -> (i32, i32, i32, i32) {
    %c0_i32 = arith.constant 0 : i32
    %c0_i32_0 = arith.constant 0 : i32
    %c0_i32_1 = arith.constant 0 : i32
    %c0_i32_2 = arith.constant 0 : i32
    %c0_i32_3 = arith.constant 0 : i32
    return %c0_i32, %c0_i32_0, %c0_i32_1, %c0_i32_2 : i32, i32, i32, i32
  }
  func.func @transform_5(%arg0: i32) -> (i32, i32, i32) {
    %c0_i32 = arith.constant 0 : i32
    %c0_i32_0 = arith.constant 0 : i32
    %c0_i32_1 = arith.constant 0 : i32
    %c0_i32_2 = arith.constant 0 : i32
    return %c0_i32, %c0_i32_0, %c0_i32_1 : i32, i32, i32
  }
  func.func @transform_6(%arg0: i32) -> (i32, i32, i32) {
    %c0_i32 = arith.constant 0 : i32
    %c0_i32_0 = arith.constant 0 : i32
    %c0_i32_1 = arith.constant 0 : i32
    %c0_i32_2 = arith.constant 0 : i32
    return %c0_i32, %c0_i32_0, %c0_i32_1 : i32, i32, i32
  }
  func.func @transform_7(%arg0: i32) -> (i32, i32, i32) {
    %c0_i32 = arith.constant 0 : i32
    %c0_i32_0 = arith.constant 0 : i32
    %c0_i32_1 = arith.constant 0 : i32
    %c0_i32_2 = arith.constant 0 : i32
    return %c0_i32, %c0_i32_0, %c0_i32_1 : i32, i32, i32
  }
  func.func @transform_8(%arg0: i32) -> (i32, i32, i32) {
    %c0_i32 = arith.constant 0 : i32
    %c0_i32_0 = arith.constant 0 : i32
    %c0_i32_1 = arith.constant 0 : i32
    %c0_i32_2 = arith.constant 0 : i32
    return %c0_i32, %c0_i32_0, %c0_i32_1 : i32, i32, i32
  }
  func.func @transform_9(%arg0: i32) -> (i32, i32, i32) {
    %c0_i32 = arith.constant 0 : i32
    %c0_i32_0 = arith.constant 0 : i32
    %c0_i32_1 = arith.constant 0 : i32
    %c0_i32_2 = arith.constant 0 : i32
    return %c0_i32, %c0_i32_0, %c0_i32_1 : i32, i32, i32
  }
  func.func @transform_10(%arg0: i32) -> (i32, i32, i32) {
    %c0_i32 = arith.constant 0 : i32
    %c0_i32_0 = arith.constant 0 : i32
    %c0_i32_1 = arith.constant 0 : i32
    %c0_i32_2 = arith.constant 0 : i32
    return %c0_i32, %c0_i32_0, %c0_i32_1 : i32, i32, i32
  }
  func.func @transform_11(%arg0: i32) -> (i32, i32, i32) {
    %c0_i32 = arith.constant 0 : i32
    %c0_i32_0 = arith.constant 0 : i32
    %c0_i32_1 = arith.constant 0 : i32
    %c0_i32_2 = arith.constant 0 : i32
    return %c0_i32, %c0_i32_0, %c0_i32_1 : i32, i32, i32
  }
  func.func @transform_12(%arg0: i32) -> (i32, i32, i32) {
    %c0_i32 = arith.constant 0 : i32
    %c0_i32_0 = arith.constant 0 : i32
    %c0_i32_1 = arith.constant 0 : i32
    %c0_i32_2 = arith.constant 0 : i32
    return %c0_i32, %c0_i32_0, %c0_i32_1 : i32, i32, i32
  }
  func.func @transform_13(%arg0: i32) -> (i32, i32, i32) {
    %c0_i32 = arith.constant 0 : i32
    %c0_i32_0 = arith.constant 0 : i32
    %c0_i32_1 = arith.constant 0 : i32
    %c0_i32_2 = arith.constant 0 : i32
    return %c0_i32, %c0_i32_0, %c0_i32_1 : i32, i32, i32
  }
  func.func @transform_14(%arg0: i32) -> (i32, i32) {
    %c0_i32 = arith.constant 0 : i32
    %c0_i32_0 = arith.constant 0 : i32
    %c0_i32_1 = arith.constant 0 : i32
    return %c0_i32, %c0_i32_0 : i32, i32
  }
  func.func @transform_15(%arg0: i32) -> (i32, i32) {
    %c0_i32 = arith.constant 0 : i32
    %c0_i32_0 = arith.constant 0 : i32
    %c0_i32_1 = arith.constant 0 : i32
    return %c0_i32, %c0_i32_0 : i32, i32
  }
  func.func @transform_16(%arg0: i32) -> (i32, i32) {
    %c0_i32 = arith.constant 0 : i32
    %c0_i32_0 = arith.constant 0 : i32
    %c0_i32_1 = arith.constant 0 : i32
    return %c0_i32, %c0_i32_0 : i32, i32
  }
  func.func @transform_17(%arg0: i32) -> (i32, i32) {
    %c0_i32 = arith.constant 0 : i32
    %c0_i32_0 = arith.constant 0 : i32
    %c0_i32_1 = arith.constant 0 : i32
    return %c0_i32, %c0_i32_0 : i32, i32
  }
  func.func @transform_18(%arg0: i32) -> (i32, i32) {
    %c0_i32 = arith.constant 0 : i32
    %c0_i32_0 = arith.constant 0 : i32
    return %arg0, %c0_i32 : i32, i32
  }
}

</mosaic_0001>

<llo_original>
// kernel: tpu_custom_call.1
$region0: #{tpu_custom_call.1}
  #allocation0 [shape = 'u32[]', space=smem, size = 0x4, offset = 0x4, fixed_abs, tag = 'smem constant byte address 0x4 - core index']
  #allocation1 [shape = 'u32[144,128]{1,0:T(1,128)}', space=vmem, size = 0x12000, scoped, tag = 'internal scratch']
  %s0 = inlined_call_operand.vmem [shape: f32[2,8,32], index: 0, kind: input, shape index: {}]
  %s1 = inlined_call_operand.vmem [shape: f32[2,8], index: 1, kind: input, shape index: {}]
  %s2 = inlined_call_operand.vmem [shape: bf16[2,32,96], index: 2, kind: input, shape index: {}]
  %s3 = inlined_call_operand.vmem [shape: f32[2,1,96], index: 3, kind: input, shape index: {}]
  %s4 = inlined_call_operand.vmem [shape: bf16[2,2,16,32], index: 4, kind: input, shape index: {}]
  %s5 = inlined_call_operand.hbm [shape: f32[2,1,32], index: 5, kind: input, shape index: {}]
  %s6 = inlined_call_operand.hbm [shape: f32[2,1,32], index: 6, kind: input, shape index: {}]
  %s7 = inlined_call_operand.hbm [shape: f32[2,1,32], index: 7, kind: input, shape index: {}]
  %s8 = inlined_call_operand.vmem [shape: bf16[2,32,64], index: 8, kind: input, shape index: {}]
  %s9 = inlined_call_operand.hbm [shape: f32[2,1,64], index: 9, kind: input, shape index: {}]
  %s10 = inlined_call_operand.vmem [shape: bf16[2,64,32], index: 10, kind: input, shape index: {}]
  %s11 = inlined_call_operand.hbm [shape: f32[2,1,32], index: 11, kind: input, shape index: {}]
  %s12 = inlined_call_operand.hbm [shape: f32[2,1,32], index: 12, kind: input, shape index: {}]
  %s13 = inlined_call_operand.vmem [shape: f32[2,1,32], index: 13, kind: input, shape index: {}]
  %s14 = inlined_call_operand.vmem [shape: f32[1,32], index: 14, kind: input, shape index: {}]
  %s15 = inlined_call_operand.vmem [shape: f32[1,32], index: 15, kind: input, shape index: {}]
  %s16 = inlined_call_operand.vmem [shape: f32[32,3], index: 16, kind: input, shape index: {}]
  %s17 = inlined_call_operand.vmem [shape: f32[1,3], index: 17, kind: input, shape index: {}]
  %s18 = inlined_call_operand.hbm [shape: f32[2,3], index: 18, kind: output, shape index: {}]
  %s19 = sld [smem:[#allocation0]]
  $region106: #{tpu_custom_call.1} parent=0
    _
  %s21 = ssub.s32 1, %s19
  %s22 = scalar_select 0, %s21, %s19
  $region1: #{tpu_custom_call.1} parent=0
    #allocation2 [shape = 'u8[1024]{0}', space=vmem, size = 0x400, scoped, tag = 'input window, operand 5, single buffered']
    #allocation3 [shape = 's32[1]{0}', space=sflag, size = 0x4, scoped, tag = 'scoped memory for tpu_custom_call.1']
    #allocation4 [shape = 's32[1]{0}', space=sflag, size = 0x4, scoped, tag = 'scoped memory for tpu_custom_call.1']
    #allocation5 [shape = 'u8[1024]{0}', space=vmem, size = 0x400, scoped, tag = 'input window, operand 6, single buffered']
    #allocation6 [shape = 's32[1]{0}', space=sflag, size = 0x4, scoped, tag = 'scoped memory for tpu_custom_call.1']
    #allocation7 [shape = 'u8[1024]{0}', space=vmem, size = 0x400, scoped, tag = 'input window, operand 7, single buffered']
    #allocation8 [shape = 'u8[1024]{0}', space=vmem, size = 0x400, scoped, tag = 'input window, operand 9, single buffered']
    #allocation9 [shape = 's32[1]{0}', space=sflag, size = 0x4, scoped, tag = 'scoped memory for tpu_custom_call.1']
    #allocation10 [shape = 'u8[1024]{0}', space=vmem, size = 0x400, scoped, tag = 'input window, operand 11, single buffered']
    #allocation11 [shape = 'u8[1024]{0}', space=vmem, size = 0x400, scoped, tag = 'input window, operand 12, single buffered']
    #allocation12 [shape = 's32[1]{0}', space=sflag, size = 0x4, scoped, tag = 'scoped memory for tpu_custom_call.1']
    #allocation13 [shape = 'u8[1024]{0}', space=vmem, size = 0x400, scoped, tag = 'output window, operand 0, single buffered']
    %23 = vsyncpa [#allocation3], 0
    %24 = vsyncpa [#allocation6], 0
    %25 = vsyncpa [#allocation9], 0
    %26 = vsyncpa [#allocation12], 0
    %27 = vsyncpa [#allocation4], 0
    // Predicated region
    $region2: #{tpu_custom_call.1} parent=1 // pred_check
      _
    $region3: #{tpu_custom_call.1} parent=1 // pred_check_branch
      %29 = sbr.rel (0) target = $region5
    $region4: #{tpu_custom_call.1} parent=1 // pred_region
      _
    $region5: #{tpu_custom_call.1} parent=1 // pred_fallthru
      _
    // Predicated region
    $region6: #{tpu_custom_call.1} parent=1 // pred_check
      _
    $region7: #{tpu_custom_call.1} parent=1 // pred_check_branch
      %31 = sbr.rel (0) target = $region9
    $region8: #{tpu_custom_call.1} parent=1 // pred_region
      _
    $region9: #{tpu_custom_call.1} parent=1 // pred_fallthru
      _
    // Predicated region
    $region10: #{tpu_custom_call.1} parent=1 // pred_check
      _
    $region11: #{tpu_custom_call.1} parent=1 // pred_check_branch
      %33 = sbr.rel (0) target = $region13
    $region12: #{tpu_custom_call.1} parent=1 // pred_region
      _
    $region13: #{tpu_custom_call.1} parent=1 // pred_fallthru
      _
    // Predicated region
    $region14: #{tpu_custom_call.1} parent=1 // pred_check
      _
    $region15: #{tpu_custom_call.1} parent=1 // pred_check_branch
      %35 = sbr.rel (0) target = $region17
    $region16: #{tpu_custom_call.1} parent=1 // pred_region
      _
    $region17: #{tpu_custom_call.1} parent=1 // pred_fallthru
      _
    // Predicated region
    $region18: #{tpu_custom_call.1} parent=1 // pred_check
      _
    $region19: #{tpu_custom_call.1} parent=1 // pred_check_branch
      %37 = sbr.rel (0) target = $region21
    $region20: #{tpu_custom_call.1} parent=1 // pred_region
      _
    $region21: #{tpu_custom_call.1} parent=1 // pred_fallthru
      _
    // Predicated region
    $region22: #{tpu_custom_call.1} parent=1 // pred_check
      _
    $region23: #{tpu_custom_call.1} parent=1 // pred_check_branch
      %39 = sbr.rel (0) target = $region25
    $region24: #{tpu_custom_call.1} parent=1 // pred_region
      %s41 = ssub.s32 32, 32
      %42 = vsyncadd [#allocation3], %s41
      %s43 = sshll.u32 [#allocation2], 4
      %s44 = int_to_ptr.vmem [resolvable:$true] %s43
      %49 = dma.hbm_to_vmem [thread:$0]  %s5, 32, %s44, [#allocation3], 16, 16, 1
    $region25: #{tpu_custom_call.1} parent=1 // pred_fallthru
      _
    // Predicated region
    $region26: #{tpu_custom_call.1} parent=1 // pred_check
      _
    $region27: #{tpu_custom_call.1} parent=1 // pred_check_branch
      %51 = sbr.rel (0) target = $region29
    $region28: #{tpu_custom_call.1} parent=1 // pred_region
      %s53 = ssub.s32 32, 32
      %54 = vsyncadd [#allocation6], %s53
      %s55 = sshll.u32 [#allocation5], 4
      %s56 = int_to_ptr.vmem [resolvable:$true] %s55
      %61 = dma.hbm_to_vmem [thread:$0]  %s6, 32, %s56, [#allocation6], 16, 16, 1
    $region29: #{tpu_custom_call.1} parent=1 // pred_fallthru
      _
    // Predicated region
    $region30: #{tpu_custom_call.1} parent=1 // pred_check
      _
    $region31: #{tpu_custom_call.1} parent=1 // pred_check_branch
      %63 = sbr.rel (0) target = $region33
    $region32: #{tpu_custom_call.1} parent=1 // pred_region
      %s65 = ssub.s32 32, 32
      %66 = vsyncadd [#allocation6], %s65
      %s67 = sshll.u32 [#allocation7], 4
      %s68 = int_to_ptr.vmem [resolvable:$true] %s67
      %73 = dma.hbm_to_vmem [thread:$0]  %s7, 32, %s68, [#allocation6], 16, 16, 1
    $region33: #{tpu_custom_call.1} parent=1 // pred_fallthru
      _
    // Predicated region
    $region34: #{tpu_custom_call.1} parent=1 // pred_check
      _
    $region35: #{tpu_custom_call.1} parent=1 // pred_check_branch
      %75 = sbr.rel (0) target = $region37
    $region36: #{tpu_custom_call.1} parent=1 // pred_region
      _
    $region37: #{tpu_custom_call.1} parent=1 // pred_fallthru
      _
    // Predicated region
    $region38: #{tpu_custom_call.1} parent=1 // pred_check
      _
    $region39: #{tpu_custom_call.1} parent=1 // pred_check_branch
      %77 = sbr.rel (0) target = $region41
    $region40: #{tpu_custom_call.1} parent=1 // pred_region
      %s79 = ssub.s32 32, 32
      %80 = vsyncadd [#allocation9], %s79
      %s81 = sshll.u32 [#allocation8], 4
      %s82 = int_to_ptr.vmem [resolvable:$true] %s81
      %87 = dma.hbm_to_vmem [thread:$0]  %s9, 32, %s82, [#allocation9], 16, 16, 1
    $region41: #{tpu_custom_call.1} parent=1 // pred_fallthru
      _
    // Predicated region
    $region42: #{tpu_custom_call.1} parent=1 // pred_check
      _
    $region43: #{tpu_custom_call.1} parent=1 // pred_check_branch
      %89 = sbr.rel (0) target = $region45
    $region44: #{tpu_custom_call.1} parent=1 // pred_region
      _
    $region45: #{tpu_custom_call.1} parent=1 // pred_fallthru
      _
    // Predicated region
    $region46: #{tpu_custom_call.1} parent=1 // pred_check
      _
    $region47: #{tpu_custom_call.1} parent=1 // pred_check_branch
      %91 = sbr.rel (0) target = $region49
    $region48: #{tpu_custom_call.1} parent=1 // pred_region
      %s93 = ssub.s32 32, 32
      %94 = vsyncadd [#allocation9], %s93
      %s95 = sshll.u32 [#allocation10], 4
      %s96 = int_to_ptr.vmem [resolvable:$true] %s95
      %101 = dma.hbm_to_vmem [thread:$0]  %s11, 32, %s96, [#allocation9], 16, 16, 1
    $region49: #{tpu_custom_call.1} parent=1 // pred_fallthru
      _
    // Predicated region
    $region50: #{tpu_custom_call.1} parent=1 // pred_check
      _
    $region51: #{tpu_custom_call.1} parent=1 // pred_check_branch
      %103 = sbr.rel (0) target = $region53
    $region52: #{tpu_custom_call.1} parent=1 // pred_region
      %s105 = ssub.s32 32, 32
      %106 = vsyncadd [#allocation12], %s105
      %s107 = sshll.u32 [#allocation11], 4
      %s108 = int_to_ptr.vmem [resolvable:$true] %s107
      %113 = dma.hbm_to_vmem [thread:$0]  %s12, 32, %s108, [#allocation12], 16, 16, 1
    $region53: #{tpu_custom_call.1} parent=1 // pred_fallthru
      _
    // Predicated region
    $region54: #{tpu_custom_call.1} parent=1 // pred_check
      _
    $region55: #{tpu_custom_call.1} parent=1 // pred_check_branch
      %115 = sbr.rel (0) target = $region57
    $region56: #{tpu_custom_call.1} parent=1 // pred_region
      _
    $region57: #{tpu_custom_call.1} parent=1 // pred_fallthru
      _
    // Predicated region
    $region58: #{tpu_custom_call.1} parent=1 // pred_check
      _
    $region59: #{tpu_custom_call.1} parent=1 // pred_check_branch
      %117 = sbr.rel (0) target = $region61
    $region60: #{tpu_custom_call.1} parent=1 // pred_region
      _
    $region61: #{tpu_custom_call.1} parent=1 // pred_fallthru
      _
    // Predicated region
    $region62: #{tpu_custom_call.1} parent=1 // pred_check
      _
    $region63: #{tpu_custom_call.1} parent=1 // pred_check_branch
      %119 = sbr.rel (0) target = $region65
    $region64: #{tpu_custom_call.1} parent=1 // pred_region
      _
    $region65: #{tpu_custom_call.1} parent=1 // pred_fallthru
      _
    // Predicated region
    $region66: #{tpu_custom_call.1} parent=1 // pred_check
      _
    $region67: #{tpu_custom_call.1} parent=1 // pred_check_branch
      %121 = sbr.rel (0) target = $region69
    $region68: #{tpu_custom_call.1} parent=1 // pred_region
      _
    $region69: #{tpu_custom_call.1} parent=1 // pred_fallthru
      _
    // Predicated region
    $region70: #{tpu_custom_call.1} parent=1 // pred_check
      _
    $region71: #{tpu_custom_call.1} parent=1 // pred_check_branch
      %123 = sbr.rel (0) target = $region73
    $region72: #{tpu_custom_call.1} parent=1 // pred_region
      _
    $region73: #{tpu_custom_call.1} parent=1 // pred_fallthru
      _
    // Predicated region
    $region74: #{tpu_custom_call.1} parent=1 // pred_check
      _
    $region75: #{tpu_custom_call.1} parent=1 // pred_check_branch
      %125 = sbr.rel (0) target = $region77
    $region76: #{tpu_custom_call.1} parent=1 // pred_region
      %126 = dma.done [#allocation3], 32
    $region77: #{tpu_custom_call.1} parent=1 // pred_fallthru
      _
    // Predicated region
    $region78: #{tpu_custom_call.1} parent=1 // pred_check
      _
    $region79: #{tpu_custom_call.1} parent=1 // pred_check_branch
      %128 = sbr.rel (0) target = $region81
    $region80: #{tpu_custom_call.1} parent=1 // pred_region
      %129 = dma.done [#allocation6], 32
    $region81: #{tpu_custom_call.1} parent=1 // pred_fallthru
      _
    // Predicated region
    $region82: #{tpu_custom_call.1} parent=1 // pred_check
      _
    $region83: #{tpu_custom_call.1} parent=1 // pred_check_branch
      %131 = sbr.rel (0) target = $region85
    $region84: #{tpu_custom_call.1} parent=1 // pred_region
      %132 = dma.done [#allocation6], 32
    $region85: #{tpu_custom_call.1} parent=1 // pred_fallthru
      _
    // Predicated region
    $region86: #{tpu_custom_call.1} parent=1 // pred_check
      _
    $region87: #{tpu_custom_call.1} parent=1 // pred_check_branch
      %134 = sbr.rel (0) target = $region89
    $region88: #{tpu_custom_call.1} parent=1 // pred_region
      %135 = dma.done [#allocation9], 32
    $region89: #{tpu_custom_call.1} parent=1 // pred_fallthru
      _
    // Predicated region
    $region90: #{tpu_custom_call.1} parent=1 // pred_check
      _
    $region91: #{tpu_custom_call.1} parent=1 // pred_check_branch
      %137 = sbr.rel (0) target = $region93
    $region92: #{tpu_custom_call.1} parent=1 // pred_region
      %138 = dma.done [#allocation9], 32
    $region93: #{tpu_custom_call.1} parent=1 // pred_fallthru
      _
    // Predicated region
    $region94: #{tpu_custom_call.1} parent=1 // pred_check
      _
    $region95: #{tpu_custom_call.1} parent=1 // pred_check_branch
      %140 = sbr.rel (0) target = $region97
    $region96: #{tpu_custom_call.1} parent=1 // pred_region
      %141 = dma.done [#allocation12], 32
    $region97: #{tpu_custom_call.1} parent=1 // pred_fallthru
      _
    %v143 = vld [vmem:[%s0] sm:$0xff]
    %v144 = vld [vmem:[%s0 + $0x8] sm:$0xff]
    %v145 = vld [vmem:[%s1] sm:$0x3]
    %v146 = vsub.f32 1.0, %v145
    %v147 = vmul.f32 %v146, -1e+09
    %v150 = vunpack.c.l.s4 1966171168
    %v151 = vunpack.c.0.s8 %v150
    %v152 = vlaneseq
    %v153 = vshrl.u32 %v152, 7
    %v154 = vsub.s32 %v151, %v153
    %v155 = vrot.slane %v147, %v154
    %v156 = vcombine.high %v155, %v155
    %v158 = vunpack.c.l.s4 1966171168
    %v159 = vunpack.c.0.s8 %v158
    %v160 = vlaneseq
    %v161 = vshrl.u32 %v160, 7
    %v162 = vsub.s32 %v159, %v161
    %v163 = vrot.slane %v155, %v162
    %v165 = vunpack.c.l.s4 1966171168
    %v166 = vunpack.c.0.s8 %v165
    %v167 = vlaneseq
    %v168 = vshrl.u32 %v167, 7
    %v169 = vsub.s32 %v166, %v168
    %v170 = vrot.slane %v156, %v169
    %v171 = vpack.c.bf16 %v144, %v143
    %v172 = vld [vmem:[%s2] sm:$0xf]
    %v173 = vld [vmem:[%s2 + $0x4] sm:$0xf]
    %v174 = vld [vmem:[%s2 + $0x8] sm:$0xf]
    %v175 = vld [vmem:[%s2 + $0xc] sm:$0xf]
    %v176 = vld [vmem:[%s3] sm:$0x1]
    %v178 = vlaneseq
    %v179 = vshrl.u32 %v178, 7
    %v180 = vsub.s32 0, %v179
    %v181 = vrot.slane %v176, %v180
    %v187 = vunpack.c.l.b16 %v172
    %v188 = vunpack.c.l.b16 %v173
    %v189 = vunpack.c.l.b16 %v174
    %v190 = vunpack.c.l.b16 %v175
    %v191 = vpack.c.b16 %v188, %v187
    %v192 = vpack.c.b16 %v190, %v189
    %vm195 = vcmask 261120
    %v197 = vsel %vm195, %v171, 0
    %199 = vmatprep.subr.bf16.mxu0 0
    %200 = vmatpush1.bf16.msra.mxu0 0
    %201 = vmatprep.subr.bf16.mxu0 0
    %202 = vmatpush1.bf16.msra.mxu0 0
    %203 = vmatprep.subr.bf16.mxu0 0
    %204 = vmatpush1.bf16.msra.mxu0 0
    %205 = vmatprep.subr.bf16.mxu0 0
    %206 = vmatpush1.bf16.msra.mxu0 0
    %207 = vmatprep.subr.bf16.mxu0 0
    %208 = vmatpush1.bf16.msra.mxu0 0
    %209 = vmatprep.subr.bf16.mxu0 0
    %210 = vmatpush1.bf16.msra.mxu0 0
    %211 = vmatprep.subr.bf16.mxu0 0
    %212 = vmatpush1.bf16.msra.mxu0 %v192
    %213 = vmatprep.subr.bf16.mxu0 0
    %214 = vmatpush1.bf16.msra.mxu0 %v191
    %215 = vmatprep.subr.bf16.mxu0 0
    %216 = vmatpush2.bf16.msra.mxu0 0
    %217 = vmatprep.subr.bf16.mxu0 0
    %218 = vmatpush2.bf16.msra.mxu0 0
    %219 = vmatprep.subr.bf16.mxu0 0
    %220 = vmatpush2.bf16.msra.mxu0 0
    %221 = vmatprep.subr.bf16.mxu0 0
    %222 = vmatpush2.bf16.msra.mxu0 0
    %223 = vmatprep.subr.bf16.mxu0 0
    %224 = vmatpush2.bf16.msra.mxu0 0
    %225 = vmatprep.subr.bf16.mxu0 0
    %226 = vmatpush2.bf16.msra.mxu0 0
    %227 = vmatprep.subr.bf16.mxu0 0
    %228 = vmatpush2.bf16.msra.mxu0 0
    %229 = vmatprep.subr.bf16.mxu0 0
    %230 = vmatpush2.bf16.msra.mxu0 0
    %231 = vmatprep.mubr.bf16.mxu0 0
    %232 = vmatmul.mubr.bf16.gmra.mxu0 %v197
    %v233 = vpop.f32.mrf.mxu0
    %v234 = vadd.f32 %v181, %v233
    %v235 = vpop.f32.mrf.mxu0
    %v236 = vpop.f32.mrf.mxu0
    %v237 = vadd.f32 %v181, %v236
    %v238 = vpop.f32.mrf.mxu0
    %239 = vdwg.mxu0
    %v240 = vld [vmem:[#allocation2] sm:$0x1]
    %v242 = vlaneseq
    %v243 = vshrl.u32 %v242, 7
    %v244 = vsub.s32 0, %v243
    %v245 = vrot.slane %v240, %v244
    %v247 = vadd.f32 %v245, 0.0
    %v248 = vpack.c.bf16 %v234, %v234
    %v249 = vpack.c.bf16 %v237, %v237
    %v250 = vlaneseq
    %v251 = vshrl.u32 %v250, 7
    %v252 = vsub.s32 0, %v251
    %v253 = vrot.slane %v163, %v252
    %v254 = vlaneseq
    %v255 = vshrl.u32 %v254, 7
    %v256 = vsub.s32 0, %v255
    %v257 = vrot.slane %v170, %v256
    %261 = vrot.lane.b32.xlu0 %v248, 96
    %v262 = vpop.permute.xlu0 %261
    %vm263 = vcmask 130048
    %v265 = vsel %vm263, %v248, 0
    %v268 = vsel %vm263, %v262, 0
    %270 = vmatprep.subr.bf16.mxu0 0
    %271 = vmatpush1.bf16.xpose.msra.mxu0 0
    %272 = vmatprep.subr.bf16.mxu0 0
    %273 = vmatpush1.bf16.xpose.msra.mxu0 0
    %274 = vmatprep.subr.bf16.mxu0 0
    %275 = vmatpush1.bf16.xpose.msra.mxu0 0
    %276 = vmatprep.subr.bf16.mxu0 0
    %277 = vmatpush1.bf16.xpose.msra.mxu0 0
    %278 = vmatprep.subr.bf16.mxu0 0
    %279 = vmatpush1.bf16.xpose.msra.mxu0 0
    %280 = vmatprep.subr.bf16.mxu0 0
    %281 = vmatpush1.bf16.xpose.msra.mxu0 0
    %282 = vmatprep.subr.bf16.mxu0 0
    %283 = vmatpush1.bf16.xpose.msra.mxu0 0
    %284 = vmatprep.subr.bf16.mxu0 0
    %285 = vmatpush1.bf16.xpose.msra.mxu0 %v268
    %286 = vmatprep.subr.bf16.mxu0 0
    %287 = vmatpush2.bf16.xpose.msra.mxu0 0
    %288 = vmatprep.subr.bf16.mxu0 0
    %289 = vmatpush2.bf16.xpose.msra.mxu0 0
    %290 = vmatprep.subr.bf16.mxu0 0
    %291 = vmatpush2.bf16.xpose.msra.mxu0 0
    %292 = vmatprep.subr.bf16.mxu0 0
    %293 = vmatpush2.bf16.xpose.msra.mxu0 0
    %294 = vmatprep.subr.bf16.mxu0 0
    %295 = vmatpush2.bf16.xpose.msra.mxu0 0
    %296 = vmatprep.subr.bf16.mxu0 0
    %297 = vmatpush2.bf16.xpose.msra.mxu0 0
    %298 = vmatprep.subr.bf16.mxu0 0
    %299 = vmatpush2.bf16.xpose.msra.mxu0 0
    %300 = vmatprep.subr.bf16.mxu0 0
    %301 = vmatpush2.bf16.xpose.msra.mxu0 0
    %302 = vmatprep.mubr.bf16.mxu0 0
    %303 = vmatmul.mubr.bf16.gmra.mxu0 %v265
    %v304 = vpop.f32.mrf.mxu0
    %v305 = vadd.f32 %v253, %v304
    %v306 = vpop.f32.mrf.mxu0
    %v307 = vpop.f32.mrf.mxu0
    %v308 = vpop.f32.mrf.mxu0
    %309 = vdwg.mxu0
    %311 = vrot.lane.b32.xlu0 %v249, 96
    %v312 = vpop.permute.xlu0 %311
    %v314 = vsel %vm263, %v249, 0
    %v317 = vsel %vm263, %v312, 0
    %319 = vmatprep.subr.bf16.mxu0 0
    %320 = vmatpush1.bf16.xpose.msra.mxu0 0
    %321 = vmatprep.subr.bf16.mxu0 0
    %322 = vmatpush1.bf16.xpose.msra.mxu0 0
    %323 = vmatprep.subr.bf16.mxu0 0
    %324 = vmatpush1.bf16.xpose.msra.mxu0 0
    %325 = vmatprep.subr.bf16.mxu0 0
    %326 = vmatpush1.bf16.xpose.msra.mxu0 0
    %327 = vmatprep.subr.bf16.mxu0 0
    %328 = vmatpush1.bf16.xpose.msra.mxu0 0
    %329 = vmatprep.subr.bf16.mxu0 0
    %330 = vmatpush1.bf16.xpose.msra.mxu0 0
    %331 = vmatprep.subr.bf16.mxu0 0
    %332 = vmatpush1.bf16.xpose.msra.mxu0 0
    %333 = vmatprep.subr.bf16.mxu0 0
    %334 = vmatpush1.bf16.xpose.msra.mxu0 %v317
    %335 = vmatprep.subr.bf16.mxu0 0
    %336 = vmatpush2.bf16.xpose.msra.mxu0 0
    %337 = vmatprep.subr.bf16.mxu0 0
    %338 = vmatpush2.bf16.xpose.msra.mxu0 0
    %339 = vmatprep.subr.bf16.mxu0 0
    %340 = vmatpush2.bf16.xpose.msra.mxu0 0
    %341 = vmatprep.subr.bf16.mxu0 0
    %342 = vmatpush2.bf16.xpose.msra.mxu0 0
    %343 = vmatprep.subr.bf16.mxu0 0
    %344 = vmatpush2.bf16.xpose.msra.mxu0 0
    %345 = vmatprep.subr.bf16.mxu0 0
    %346 = vmatpush2.bf16.xpose.msra.mxu0 0
    %347 = vmatprep.subr.bf16.mxu0 0
    %348 = vmatpush2.bf16.xpose.msra.mxu0 0
    %349 = vmatprep.subr.bf16.mxu0 0
    %350 = vmatpush2.bf16.xpose.msra.mxu0 0
    %351 = vmatprep.mubr.bf16.mxu0 0
    %352 = vmatmul.mubr.bf16.gmra.mxu0 %v314
    %v353 = vpop.f32.mrf.mxu0
    %v354 = vadd.f32 %v257, %v353
    %v355 = vpop.f32.mrf.mxu0
    %v356 = vpop.f32.mrf.mxu0
    %v357 = vpop.f32.mrf.mxu0
    %358 = vdwg.mxu0
    %vm359 = vcmask 64512
    %v360 = vsel %vm359, %v305, -inf
    %361 = vmax.xlane.f32.xlu0 %v360
    %v362 = vpop.xlane.xlu0 %361
    %v363 = vsel %vm359, %v354, -inf
    %364 = vmax.xlane.f32.xlu0 %v363
    %v365 = vpop.xlane.xlu0 %364
    %v366 = vsub.f32 %v305, %v362
    %v367 = vsub.f32 %v354, %v365
    %v368 = vmul.f32 %v366, 1.442695
    %v369 = vpow.pop %v368
    %v370 = vmul.f32 %v367, 1.442695
    %v371 = vpow.pop %v370
    %v372 = vsel %vm359, %v369, 0.0
    %373 = vadd.xlane.f32.xlu0 %v372
    %v374 = vpop.xlane.xlu0 %373
    %v375 = vsel %vm359, %v371, 0.0
    %376 = vadd.xlane.f32.xlu0 %v375
    %v377 = vpop.xlane.xlu0 %376
    %v378 = vrcp.pop %v374
    %v379 = vrcp.pop %v377
    %v380 = vmul.f32 %v369, %v378
    %v381 = vmul.f32 %v371, %v379
    %v382 = vpack.c.bf16 %v380, %v380
    %v383 = vpack.c.bf16 %v381, %v381
    %384 = vrot.lane.b32.xlu0 %v248, 64
    %v385 = vpop.permute.xlu0 %384
    %v387 = vsel %vm359, %v382, 0
    %vm389 = vcmask 1043456
    %v391 = vsel %vm389, %v385, 0
    %393 = vmatprep.subr.bf16.mxu0 0
    %394 = vmatpush1.bf16.msra.mxu0 0
    %395 = vmatprep.subr.bf16.mxu0 0
    %396 = vmatpush1.bf16.msra.mxu0 0
    %397 = vmatprep.subr.bf16.mxu0 0
    %398 = vmatpush1.bf16.msra.mxu0 0
    %399 = vmatprep.subr.bf16.mxu0 0
    %400 = vmatpush1.bf16.msra.mxu0 0
    %401 = vmatprep.subr.bf16.mxu0 0
    %402 = vmatpush1.bf16.msra.mxu0 0
    %403 = vmatprep.subr.bf16.mxu0 0
    %404 = vmatpush1.bf16.msra.mxu0 0
    %405 = vmatprep.subr.bf16.mxu0 0
    %406 = vmatpush1.bf16.msra.mxu0 0
    %407 = vmatprep.subr.bf16.mxu0 0
    %408 = vmatpush1.bf16.msra.mxu0 %v391
    %409 = vmatprep.subr.bf16.mxu0 0
    %410 = vmatpush2.bf16.msra.mxu0 0
    %411 = vmatprep.subr.bf16.mxu0 0
    %412 = vmatpush2.bf16.msra.mxu0 0
    %413 = vmatprep.subr.bf16.mxu0 0
    %414 = vmatpush2.bf16.msra.mxu0 0
    %415 = vmatprep.subr.bf16.mxu0 0
    %416 = vmatpush2.bf16.msra.mxu0 0
    %417 = vmatprep.subr.bf16.mxu0 0
    %418 = vmatpush2.bf16.msra.mxu0 0
    %419 = vmatprep.subr.bf16.mxu0 0
    %420 = vmatpush2.bf16.msra.mxu0 0
    %421 = vmatprep.subr.bf16.mxu0 0
    %422 = vmatpush2.bf16.msra.mxu0 0
    %423 = vmatprep.subr.bf16.mxu0 0
    %424 = vmatpush2.bf16.msra.mxu0 0
    %425 = vmatprep.mubr.bf16.mxu0 0
    %426 = vmatmul.mubr.bf16.gmra.mxu0 %v387
    %v427 = vpop.f32.mrf.mxu0
    %v428 = vadd.f32 0.0, %v427
    %v429 = vpop.f32.mrf.mxu0
    %v430 = vpop.f32.mrf.mxu0
    %v431 = vpop.f32.mrf.mxu0
    %432 = vdwg.mxu0
    %433 = vrot.lane.b32.xlu0 %v249, 64
    %v434 = vpop.permute.xlu0 %433
    %v436 = vsel %vm359, %v383, 0
    %v439 = vsel %vm389, %v434, 0
    %441 = vmatprep.subr.bf16.mxu0 0
    %442 = vmatpush1.bf16.msra.mxu0 0
    %443 = vmatprep.subr.bf16.mxu0 0
    %444 = vmatpush1.bf16.msra.mxu0 0
    %445 = vmatprep.subr.bf16.mxu0 0
    %446 = vmatpush1.bf16.msra.mxu0 0
    %447 = vmatprep.subr.bf16.mxu0 0
    %448 = vmatpush1.bf16.msra.mxu0 0
    %449 = vmatprep.subr.bf16.mxu0 0
    %450 = vmatpush1.bf16.msra.mxu0 0
    %451 = vmatprep.subr.bf16.mxu0 0
    %452 = vmatpush1.bf16.msra.mxu0 0
    %453 = vmatprep.subr.bf16.mxu0 0
    %454 = vmatpush1.bf16.msra.mxu0 0
    %455 = vmatprep.subr.bf16.mxu0 0
    %456 = vmatpush1.bf16.msra.mxu0 %v439
    %457 = vmatprep.subr.bf16.mxu0 0
    %458 = vmatpush2.bf16.msra.mxu0 0
    %459 = vmatprep.subr.bf16.mxu0 0
    %460 = vmatpush2.bf16.msra.mxu0 0
    %461 = vmatprep.subr.bf16.mxu0 0
    %462 = vmatpush2.bf16.msra.mxu0 0
    %463 = vmatprep.subr.bf16.mxu0 0
    %464 = vmatpush2.bf16.msra.mxu0 0
    %465 = vmatprep.subr.bf16.mxu0 0
    %466 = vmatpush2.bf16.msra.mxu0 0
    %467 = vmatprep.subr.bf16.mxu0 0
    %468 = vmatpush2.bf16.msra.mxu0 0
    %469 = vmatprep.subr.bf16.mxu0 0
    %470 = vmatpush2.bf16.msra.mxu0 0
    %471 = vmatprep.subr.bf16.mxu0 0
    %472 = vmatpush2.bf16.msra.mxu0 0
    %473 = vmatprep.mubr.bf16.mxu0 0
    %474 = vmatmul.mubr.bf16.gmra.mxu0 %v436
    %v475 = vpop.f32.mrf.mxu0
    %v476 = vadd.f32 0.0, %v475
    %v477 = vpop.f32.mrf.mxu0
    %v478 = vpop.f32.mrf.mxu0
    %v479 = vpop.f32.mrf.mxu0
    %480 = vdwg.mxu0
    %v481 = vpack.c.bf16 %v476, %v428
    %v482 = vld [vmem:[%s4] sm:$0xf]
    %v483 = vld [vmem:[%s4 + $0x4] sm:$0xf]
    %v486 = vunpack.c.l.b16 %v482
    %v487 = vunpack.c.l.b16 %v483
    %v488 = vpack.c.b16 %v487, %v486
    %v491 = vsel %vm263, %v481, 0
    %493 = vmatprep.subr.bf16.mxu0 0
    %494 = vmatpush1.bf16.msra.mxu0 0
    %495 = vmatprep.subr.bf16.mxu0 0
    %496 = vmatpush1.bf16.msra.mxu0 0
    %497 = vmatprep.subr.bf16.mxu0 0
    %498 = vmatpush1.bf16.msra.mxu0 0
    %499 = vmatprep.subr.bf16.mxu0 0
    %500 = vmatpush1.bf16.msra.mxu0 0
    %501 = vmatprep.subr.bf16.mxu0 0
    %502 = vmatpush1.bf16.msra.mxu0 0
    %503 = vmatprep.subr.bf16.mxu0 0
    %504 = vmatpush1.bf16.msra.mxu0 0
    %505 = vmatprep.subr.bf16.mxu0 0
    %506 = vmatpush1.bf16.msra.mxu0 0
    %507 = vmatprep.subr.bf16.mxu0 0
    %508 = vmatpush1.bf16.msra.mxu0 %v488
    %509 = vmatprep.subr.bf16.mxu0 0
    %510 = vmatpush2.bf16.msra.mxu0 0
    %511 = vmatprep.subr.bf16.mxu0 0
    %512 = vmatpush2.bf16.msra.mxu0 0
    %513 = vmatprep.subr.bf16.mxu0 0
    %514 = vmatpush2.bf16.msra.mxu0 0
    %515 = vmatprep.subr.bf16.mxu0 0
    %516 = vmatpush2.bf16.msra.mxu0 0
    %517 = vmatprep.subr.bf16.mxu0 0
    %518 = vmatpush2.bf16.msra.mxu0 0
    %519 = vmatprep.subr.bf16.mxu0 0
    %520 = vmatpush2.bf16.msra.mxu0 0
    %521 = vmatprep.subr.bf16.mxu0 0
    %522 = vmatpush2.bf16.msra.mxu0 0
    %523 = vmatprep.subr.bf16.mxu0 0
    %524 = vmatpush2.bf16.msra.mxu0 0
    %525 = vmatprep.mubr.bf16.mxu0 0
    %526 = vmatmul.mubr.bf16.gmra.mxu0 %v491
    %v527 = vpop.f32.mrf.mxu0
    %v528 = vadd.f32 0.0, %v527
    %v529 = vpop.f32.mrf.mxu0
    %v530 = vpop.f32.mrf.mxu0
    %v531 = vadd.f32 0.0, %v530
    %v532 = vpop.f32.mrf.mxu0
    %533 = vdwg.mxu0
    %v534 = vadd.f32 %v247, %v528
    %v535 = vadd.f32 %v247, %v531
    %536 = vrot.lane.b32.xlu0 %v248, 112
    %v537 = vpop.permute.xlu0 %536
    %538 = vrot.lane.b32.xlu0 %v248, 80
    %v539 = vpop.permute.xlu0 %538
    %v541 = vsel %vm263, %v537, 0
    %v544 = vsel %vm263, %v539, 0
    %546 = vmatprep.subr.bf16.mxu0 0
    %547 = vmatpush1.bf16.xpose.msra.mxu0 0
    %548 = vmatprep.subr.bf16.mxu0 0
    %549 = vmatpush1.bf16.xpose.msra.mxu0 0
    %550 = vmatprep.subr.bf16.mxu0 0
    %551 = vmatpush1.bf16.xpose.msra.mxu0 0
    %552 = vmatprep.subr.bf16.mxu0 0
    %553 = vmatpush1.bf16.xpose.msra.mxu0 0
    %554 = vmatprep.subr.bf16.mxu0 0
    %555 = vmatpush1.bf16.xpose.msra.mxu0 0
    %556 = vmatprep.subr.bf16.mxu0 0
    %557 = vmatpush1.bf16.xpose.msra.mxu0 0
    %558 = vmatprep.subr.bf16.mxu0 0
    %559 = vmatpush1.bf16.xpose.msra.mxu0 0
    %560 = vmatprep.subr.bf16.mxu0 0
    %561 = vmatpush1.bf16.xpose.msra.mxu0 %v544
    %562 = vmatprep.subr.bf16.mxu0 0
    %563 = vmatpush2.bf16.xpose.msra.mxu0 0
    %564 = vmatprep.subr.bf16.mxu0 0
    %565 = vmatpush2.bf16.xpose.msra.mxu0 0
    %566 = vmatprep.subr.bf16.mxu0 0
    %567 = vmatpush2.bf16.xpose.msra.mxu0 0
    %568 = vmatprep.subr.bf16.mxu0 0
    %569 = vmatpush2.bf16.xpose.msra.mxu0 0
    %570 = vmatprep.subr.bf16.mxu0 0
    %571 = vmatpush2.bf16.xpose.msra.mxu0 0
    %572 = vmatprep.subr.bf16.mxu0 0
    %573 = vmatpush2.bf16.xpose.msra.mxu0 0
    %574 = vmatprep.subr.bf16.mxu0 0
    %575 = vmatpush2.bf16.xpose.msra.mxu0 0
    %576 = vmatprep.subr.bf16.mxu0 0
    %577 = vmatpush2.bf16.xpose.msra.mxu0 0
    %578 = vmatprep.mubr.bf16.mxu0 0
    %579 = vmatmul.mubr.bf16.gmra.mxu0 %v541
    %v580 = vpop.f32.mrf.mxu0
    %v581 = vadd.f32 %v253, %v580
    %v582 = vpop.f32.mrf.mxu0
    %v583 = vpop.f32.mrf.mxu0
    %v584 = vpop.f32.mrf.mxu0
    %585 = vdwg.mxu0
    %586 = vrot.lane.b32.xlu0 %v249, 112
    %v587 = vpop.permute.xlu0 %586
    %588 = vrot.lane.b32.xlu0 %v249, 80
    %v589 = vpop.permute.xlu0 %588
    %v591 = vsel %vm263, %v587, 0
    %v594 = vsel %vm263, %v589, 0
    %596 = vmatprep.subr.bf16.mxu0 0
    %597 = vmatpush1.bf16.xpose.msra.mxu0 0
    %598 = vmatprep.subr.bf16.mxu0 0
    %599 = vmatpush1.bf16.xpose.msra.mxu0 0
    %600 = vmatprep.subr.bf16.mxu0 0
    %601 = vmatpush1.bf16.xpose.msra.mxu0 0
    %602 = vmatprep.subr.bf16.mxu0 0
    %603 = vmatpush1.bf16.xpose.msra.mxu0 0
    %604 = vmatprep.subr.bf16.mxu0 0
    %605 = vmatpush1.bf16.xpose.msra.mxu0 0
    %606 = vmatprep.subr.bf16.mxu0 0
    %607 = vmatpush1.bf16.xpose.msra.mxu0 0
    %608 = vmatprep.subr.bf16.mxu0 0
    %609 = vmatpush1.bf16.xpose.msra.mxu0 0
    %610 = vmatprep.subr.bf16.mxu0 0
    %611 = vmatpush1.bf16.xpose.msra.mxu0 %v594
    %612 = vmatprep.subr.bf16.mxu0 0
    %613 = vmatpush2.bf16.xpose.msra.mxu0 0
    %614 = vmatprep.subr.bf16.mxu0 0
    %615 = vmatpush2.bf16.xpose.msra.mxu0 0
    %616 = vmatprep.subr.bf16.mxu0 0
    %617 = vmatpush2.bf16.xpose.msra.mxu0 0
    %618 = vmatprep.subr.bf16.mxu0 0
    %619 = vmatpush2.bf16.xpose.msra.mxu0 0
    %620 = vmatprep.subr.bf16.mxu0 0
    %621 = vmatpush2.bf16.xpose.msra.mxu0 0
    %622 = vmatprep.subr.bf16.mxu0 0
    %623 = vmatpush2.bf16.xpose.msra.mxu0 0
    %624 = vmatprep.subr.bf16.mxu0 0
    %625 = vmatpush2.bf16.xpose.msra.mxu0 0
    %626 = vmatprep.subr.bf16.mxu0 0
    %627 = vmatpush2.bf16.xpose.msra.mxu0 0
    %628 = vmatprep.mubr.bf16.mxu0 0
    %629 = vmatmul.mubr.bf16.gmra.mxu0 %v591
    %v630 = vpop.f32.mrf.mxu0
    %v631 = vadd.f32 %v257, %v630
    %v632 = vpop.f32.mrf.mxu0
    %v633 = vpop.f32.mrf.mxu0
    %v634 = vpop.f32.mrf.mxu0
    %635 = vdwg.mxu0
    %v636 = vsel %vm359, %v581, -inf
    %637 = vmax.xlane.f32.xlu0 %v636
    %v638 = vpop.xlane.xlu0 %637
    %v639 = vsel %vm359, %v631, -inf
    %640 = vmax.xlane.f32.xlu0 %v639
    %v641 = vpop.xlane.xlu0 %640
    %v642 = vsub.f32 %v581, %v638
    %v643 = vsub.f32 %v631, %v641
    %v644 = vmul.f32 %v642, 1.442695
    %v645 = vpow.pop %v644
    %v646 = vmul.f32 %v643, 1.442695
    %v647 = vpow.pop %v646
    %v648 = vsel %vm359, %v645, 0.0
    %649 = vadd.xlane.f32.xlu0 %v648
    %v650 = vpop.xlane.xlu0 %649
    %v651 = vsel %vm359, %v647, 0.0
    %652 = vadd.xlane.f32.xlu0 %v651
    %v653 = vpop.xlane.xlu0 %652
    %v654 = vrcp.pop %v650
    %v655 = vrcp.pop %v653
    %v656 = vmul.f32 %v645, %v654
    %v657 = vmul.f32 %v647, %v655
    %v658 = vpack.c.bf16 %v656, %v656
    %v659 = vpack.c.bf16 %v657, %v657
    %660 = vrot.lane.b32.xlu0 %v248, 48
    %v661 = vpop.permute.xlu0 %660
    %v663 = vsel %vm359, %v658, 0
    %v666 = vsel %vm389, %v661, 0
    %668 = vmatprep.subr.bf16.mxu0 0
    %669 = vmatpush1.bf16.msra.mxu0 0
    %670 = vmatprep.subr.bf16.mxu0 0
    %671 = vmatpush1.bf16.msra.mxu0 0
    %672 = vmatprep.subr.bf16.mxu0 0
    %673 = vmatpush1.bf16.msra.mxu0 0
    %674 = vmatprep.subr.bf16.mxu0 0
    %675 = vmatpush1.bf16.msra.mxu0 0
    %676 = vmatprep.subr.bf16.mxu0 0
    %677 = vmatpush1.bf16.msra.mxu0 0
    %678 = vmatprep.subr.bf16.mxu0 0
    %679 = vmatpush1.bf16.msra.mxu0 0
    %680 = vmatprep.subr.bf16.mxu0 0
    %681 = vmatpush1.bf16.msra.mxu0 0
    %682 = vmatprep.subr.bf16.mxu0 0
    %683 = vmatpush1.bf16.msra.mxu0 %v666
    %684 = vmatprep.subr.bf16.mxu0 0
    %685 = vmatpush2.bf16.msra.mxu0 0
    %686 = vmatprep.subr.bf16.mxu0 0
    %687 = vmatpush2.bf16.msra.mxu0 0
    %688 = vmatprep.subr.bf16.mxu0 0
    %689 = vmatpush2.bf16.msra.mxu0 0
    %690 = vmatprep.subr.bf16.mxu0 0
    %691 = vmatpush2.bf16.msra.mxu0 0
    %692 = vmatprep.subr.bf16.mxu0 0
    %693 = vmatpush2.bf16.msra.mxu0 0
    %694 = vmatprep.subr.bf16.mxu0 0
    %695 = vmatpush2.bf16.msra.mxu0 0
    %696 = vmatprep.subr.bf16.mxu0 0
    %697 = vmatpush2.bf16.msra.mxu0 0
    %698 = vmatprep.subr.bf16.mxu0 0
    %699 = vmatpush2.bf16.msra.mxu0 0
    %700 = vmatprep.mubr.bf16.mxu0 0
    %701 = vmatmul.mubr.bf16.gmra.mxu0 %v663
    %v702 = vpop.f32.mrf.mxu0
    %v703 = vadd.f32 0.0, %v702
    %v704 = vpop.f32.mrf.mxu0
    %v705 = vpop.f32.mrf.mxu0
    %v706 = vpop.f32.mrf.mxu0
    %707 = vdwg.mxu0
    %708 = vrot.lane.b32.xlu0 %v249, 48
    %v709 = vpop.permute.xlu0 %708
    %v711 = vsel %vm359, %v659, 0
    %v714 = vsel %vm389, %v709, 0
    %716 = vmatprep.subr.bf16.mxu0 0
    %717 = vmatpush1.bf16.msra.mxu0 0
    %718 = vmatprep.subr.bf16.mxu0 0
    %719 = vmatpush1.bf16.msra.mxu0 0
    %720 = vmatprep.subr.bf16.mxu0 0
    %721 = vmatpush1.bf16.msra.mxu0 0
    %722 = vmatprep.subr.bf16.mxu0 0
    %723 = vmatpush1.bf16.msra.mxu0 0
    %724 = vmatprep.subr.bf16.mxu0 0
    %725 = vmatpush1.bf16.msra.mxu0 0
    %726 = vmatprep.subr.bf16.mxu0 0
    %727 = vmatpush1.bf16.msra.mxu0 0
    %728 = vmatprep.subr.bf16.mxu0 0
    %729 = vmatpush1.bf16.msra.mxu0 0
    %730 = vmatprep.subr.bf16.mxu0 0
    %731 = vmatpush1.bf16.msra.mxu0 %v714
    %732 = vmatprep.subr.bf16.mxu0 0
    %733 = vmatpush2.bf16.msra.mxu0 0
    %734 = vmatprep.subr.bf16.mxu0 0
    %735 = vmatpush2.bf16.msra.mxu0 0
    %736 = vmatprep.subr.bf16.mxu0 0
    %737 = vmatpush2.bf16.msra.mxu0 0
    %738 = vmatprep.subr.bf16.mxu0 0
    %739 = vmatpush2.bf16.msra.mxu0 0
    %740 = vmatprep.subr.bf16.mxu0 0
    %741 = vmatpush2.bf16.msra.mxu0 0
    %742 = vmatprep.subr.bf16.mxu0 0
    %743 = vmatpush2.bf16.msra.mxu0 0
    %744 = vmatprep.subr.bf16.mxu0 0
    %745 = vmatpush2.bf16.msra.mxu0 0
    %746 = vmatprep.subr.bf16.mxu0 0
    %747 = vmatpush2.bf16.msra.mxu0 0
    %748 = vmatprep.mubr.bf16.mxu0 0
    %749 = vmatmul.mubr.bf16.gmra.mxu0 %v711
    %v750 = vpop.f32.mrf.mxu0
    %v751 = vadd.f32 0.0, %v750
    %v752 = vpop.f32.mrf.mxu0
    %v753 = vpop.f32.mrf.mxu0
    %v754 = vpop.f32.mrf.mxu0
    %755 = vdwg.mxu0
    %v756 = vpack.c.bf16 %v751, %v703
    %s757 = scalar_lea.vmem %s4, 8
    %v758 = vld [vmem:[%s757] sm:$0xf]
    %v759 = vld [vmem:[%s757 + $0x4] sm:$0xf]
    %v762 = vunpack.c.l.b16 %v758
    %v763 = vunpack.c.l.b16 %v759
    %v764 = vpack.c.b16 %v763, %v762
    %v767 = vsel %vm263, %v756, 0
    %769 = vmatprep.subr.bf16.mxu0 0
    %770 = vmatpush1.bf16.msra.mxu0 0
    %771 = vmatprep.subr.bf16.mxu0 0
    %772 = vmatpush1.bf16.msra.mxu0 0
    %773 = vmatprep.subr.bf16.mxu0 0
    %774 = vmatpush1.bf16.msra.mxu0 0
    %775 = vmatprep.subr.bf16.mxu0 0
    %776 = vmatpush1.bf16.msra.mxu0 0
    %777 = vmatprep.subr.bf16.mxu0 0
    %778 = vmatpush1.bf16.msra.mxu0 0
    %779 = vmatprep.subr.bf16.mxu0 0
    %780 = vmatpush1.bf16.msra.mxu0 0
    %781 = vmatprep.subr.bf16.mxu0 0
    %782 = vmatpush1.bf16.msra.mxu0 0
    %783 = vmatprep.subr.bf16.mxu0 0
    %784 = vmatpush1.bf16.msra.mxu0 %v764
    %785 = vmatprep.subr.bf16.mxu0 0
    %786 = vmatpush2.bf16.msra.mxu0 0
    %787 = vmatprep.subr.bf16.mxu0 0
    %788 = vmatpush2.bf16.msra.mxu0 0
    %789 = vmatprep.subr.bf16.mxu0 0
    %790 = vmatpush2.bf16.msra.mxu0 0
    %791 = vmatprep.subr.bf16.mxu0 0
    %792 = vmatpush2.bf16.msra.mxu0 0
    %793 = vmatprep.subr.bf16.mxu0 0
    %794 = vmatpush2.bf16.msra.mxu0 0
    %795 = vmatprep.subr.bf16.mxu0 0
    %796 = vmatpush2.bf16.msra.mxu0 0
    %797 = vmatprep.subr.bf16.mxu0 0
    %798 = vmatpush2.bf16.msra.mxu0 0
    %799 = vmatprep.subr.bf16.mxu0 0
    %800 = vmatpush2.bf16.msra.mxu0 0
    %801 = vmatprep.mubr.bf16.mxu0 0
    %802 = vmatmul.mubr.bf16.gmra.mxu0 %v767
    %v803 = vpop.f32.mrf.mxu0
    %v804 = vadd.f32 0.0, %v803
    %v805 = vpop.f32.mrf.mxu0
    %v806 = vpop.f32.mrf.mxu0
    %v807 = vadd.f32 0.0, %v806
    %v808 = vpop.f32.mrf.mxu0
    %809 = vdwg.mxu0
    %v810 = vadd.f32 %v534, %v804
    %v811 = vadd.f32 %v535, %v807
    %v812 = vadd.f32 %v143, %v810
    %v813 = vadd.f32 %v144, %v811
    %v814 = vld [vmem:[#allocation5] sm:$0x1]
    %v815 = vld [vmem:[#allocation7] sm:$0x1]
    %v816 = vsel %vm195, %v812, 0.0
    %817 = vadd.xlane.f32.xlu0 %v816
    %v818 = vpop.xlane.xlu0 %817
    %v819 = vsel %vm195, %v813, 0.0
    %820 = vadd.xlane.f32.xlu0 %v819
    %v821 = vpop.xlane.xlu0 %820
    %v822 = vrcp.pop 32.0
    %v823 = vmul.f32 %v818, %v822
    %v824 = vmul.f32 %v821, %v822
    %v825 = vsub.f32 %v812, %v823
    %v826 = vsub.f32 %v813, %v824
    %v827 = vmul.f32 %v825, %v825
    %v828 = vmul.f32 %v826, %v826
    %v829 = vsel %vm195, %v827, 0.0
    %830 = vadd.xlane.f32.xlu0 %v829
    %v831 = vpop.xlane.xlu0 %830
    %v832 = vsel %vm195, %v828, 0.0
    %833 = vadd.xlane.f32.xlu0 %v832
    %v834 = vpop.xlane.xlu0 %833
    %v835 = vmul.f32 %v831, %v822
    %v836 = vmul.f32 %v834, %v822
    %v837 = vadd.f32 %v835, 1e-05
    %v838 = vadd.f32 %v836, 1e-05
    %v839 = vrsqrt.pop %v837
    %v840 = vrsqrt.pop %v838
    %v841 = vmul.f32 %v825, %v839
    %v842 = vmul.f32 %v826, %v840
    %v844 = vlaneseq
    %v845 = vshrl.u32 %v844, 7
    %v846 = vsub.s32 0, %v845
    %v847 = vrot.slane %v814, %v846
    %v849 = vmul.f32 %v841, %v847
    %v850 = vmul.f32 %v842, %v847
    %v852 = vlaneseq
    %v853 = vshrl.u32 %v852, 7
    %v854 = vsub.s32 0, %v853
    %v855 = vrot.slane %v815, %v854
    %v857 = vadd.f32 %v849, %v855
    %v858 = vadd.f32 %v850, %v855
    %v859 = vpack.c.bf16 %v858, %v857
    %v860 = vld [vmem:[%s8] sm:$0xf]
    %v861 = vld [vmem:[%s8 + $0x4] sm:$0xf]
    %v862 = vld [vmem:[%s8 + $0x8] sm:$0xf]
    %v863 = vld [vmem:[%s8 + $0xc] sm:$0xf]
    %v864 = vld [vmem:[#allocation8] sm:$0x1]
    %v866 = vlaneseq
    %v867 = vshrl.u32 %v866, 7
    %v868 = vsub.s32 0, %v867
    %v869 = vrot.slane %v864, %v868
    %v875 = vunpack.c.l.b16 %v860
    %v876 = vunpack.c.l.b16 %v861
    %v877 = vunpack.c.l.b16 %v862
    %v878 = vunpack.c.l.b16 %v863
    %v879 = vpack.c.b16 %v876, %v875
    %v880 = vpack.c.b16 %v878, %v877
    %v884 = vsel %vm195, %v859, 0
    %886 = vmatprep.subr.bf16.mxu0 0
    %887 = vmatpush1.bf16.msra.mxu0 0
    %888 = vmatprep.subr.bf16.mxu0 0
    %889 = vmatpush1.bf16.msra.mxu0 0
    %890 = vmatprep.subr.bf16.mxu0 0
    %891 = vmatpush1.bf16.msra.mxu0 0
    %892 = vmatprep.subr.bf16.mxu0 0
    %893 = vmatpush1.bf16.msra.mxu0 0
    %894 = vmatprep.subr.bf16.mxu0 0
    %895 = vmatpush1.bf16.msra.mxu0 0
    %896 = vmatprep.subr.bf16.mxu0 0
    %897 = vmatpush1.bf16.msra.mxu0 0
    %898 = vmatprep.subr.bf16.mxu0 0
    %899 = vmatpush1.bf16.msra.mxu0 %v880
    %900 = vmatprep.subr.bf16.mxu0 0
    %901 = vmatpush1.bf16.msra.mxu0 %v879
    %902 = vmatprep.subr.bf16.mxu0 0
    %903 = vmatpush2.bf16.msra.mxu0 0
    %904 = vmatprep.subr.bf16.mxu0 0
    %905 = vmatpush2.bf16.msra.mxu0 0
    %906 = vmatprep.subr.bf16.mxu0 0
    %907 = vmatpush2.bf16.msra.mxu0 0
    %908 = vmatprep.subr.bf16.mxu0 0
    %909 = vmatpush2.bf16.msra.mxu0 0
    %910 = vmatprep.subr.bf16.mxu0 0
    %911 = vmatpush2.bf16.msra.mxu0 0
    %912 = vmatprep.subr.bf16.mxu0 0
    %913 = vmatpush2.bf16.msra.mxu0 0
    %914 = vmatprep.subr.bf16.mxu0 0
    %915 = vmatpush2.bf16.msra.mxu0 0
    %916 = vmatprep.subr.bf16.mxu0 0
    %917 = vmatpush2.bf16.msra.mxu0 0
    %918 = vmatprep.mubr.bf16.mxu0 0
    %919 = vmatmul.mubr.bf16.gmra.mxu0 %v884
    %v920 = vpop.f32.mrf.mxu0
    %v921 = vadd.f32 %v869, %v920
    %v922 = vpop.f32.mrf.mxu0
    %v923 = vpop.f32.mrf.mxu0
    %v924 = vadd.f32 %v869, %v923
    %v925 = vpop.f32.mrf.mxu0
    %926 = vdwg.mxu0
    %v927 = vmul.f32 %v921, %v921
    %v928 = vmul.f32 %v924, %v924
    %v929 = vmul.f32 %v921, %v927
    %v930 = vmul.f32 %v924, %v928
    %v931 = vmul.f32 %v929, 0.044715
    %v932 = vmul.f32 %v930, 0.044715
    %v933 = vadd.f32 %v921, %v931
    %v934 = vadd.f32 %v924, %v932
    %v935 = vmul.f32 %v933, 0.7978846
    %v936 = vmul.f32 %v934, 0.7978846
    %v937 = vtanh.pop %v935
    %v938 = vtanh.pop %v936
    %v939 = vadd.f32 %v937, 1.0
    %v940 = vadd.f32 %v938, 1.0
    %v941 = vmul.f32 %v939, 0.5
    %v942 = vmul.f32 %v940, 0.5
    %v943 = vmul.f32 %v921, %v941
    %v944 = vmul.f32 %v924, %v942
    %v945 = vpack.c.bf16 %v944, %v943
    %v946 = vld [vmem:[%s10] sm:$0xf]
    %v947 = vld [vmem:[%s10 + $0x4] sm:$0xf]
    %v948 = vld [vmem:[%s10 + $0x8] sm:$0xf]
    %v949 = vld [vmem:[%s10 + $0xc] sm:$0xf]
    %v950 = vld [vmem:[%s10 + $0x10] sm:$0xf]
    %v951 = vld [vmem:[%s10 + $0x14] sm:$0xf]
    %v952 = vld [vmem:[%s10 + $0x18] sm:$0xf]
    %v953 = vld [vmem:[%s10 + $0x1c] sm:$0xf]
    %v954 = vld [vmem:[#allocation10] sm:$0x1]
    %v956 = vlaneseq
    %v957 = vshrl.u32 %v956, 7
    %v958 = vsub.s32 0, %v957
    %v959 = vrot.slane %v954, %v958
    %v969 = vunpack.c.l.b16 %v946
    %v970 = vunpack.c.l.b16 %v947
    %v971 = vunpack.c.l.b16 %v948
    %v972 = vunpack.c.l.b16 %v949
    %v973 = vunpack.c.l.b16 %v950
    %v974 = vunpack.c.l.b16 %v951
    %v975 = vunpack.c.l.b16 %v952
    %v976 = vunpack.c.l.b16 %v953
    %v977 = vpack.c.b16 %v970, %v969
    %v978 = vpack.c.b16 %v972, %v971
    %v979 = vpack.c.b16 %v974, %v973
    %v980 = vpack.c.b16 %v976, %v975
    %vm985 = vcmask 523264
    %v987 = vsel %vm985, %v945, 0
    %989 = vmatprep.subr.bf16.mxu0 0
    %990 = vmatpush1.bf16.msra.mxu0 0
    %991 = vmatprep.subr.bf16.mxu0 0
    %992 = vmatpush1.bf16.msra.mxu0 0
    %993 = vmatprep.subr.bf16.mxu0 0
    %994 = vmatpush1.bf16.msra.mxu0 0
    %995 = vmatprep.subr.bf16.mxu0 0
    %996 = vmatpush1.bf16.msra.mxu0 0
    %997 = vmatprep.subr.bf16.mxu0 0
    %998 = vmatpush1.bf16.msra.mxu0 %v980
    %999 = vmatprep.subr.bf16.mxu0 0
    %1000 = vmatpush1.bf16.msra.mxu0 %v979
    %1001 = vmatprep.subr.bf16.mxu0 0
    %1002 = vmatpush1.bf16.msra.mxu0 %v978
    %1003 = vmatprep.subr.bf16.mxu0 0
    %1004 = vmatpush1.bf16.msra.mxu0 %v977
    %1005 = vmatprep.subr.bf16.mxu0 0
    %1006 = vmatpush2.bf16.msra.mxu0 0
    %1007 = vmatprep.subr.bf16.mxu0 0
    %1008 = vmatpush2.bf16.msra.mxu0 0
    %1009 = vmatprep.subr.bf16.mxu0 0
    %1010 = vmatpush2.bf16.msra.mxu0 0
    %1011 = vmatprep.subr.bf16.mxu0 0
    %1012 = vmatpush2.bf16.msra.mxu0 0
    %1013 = vmatprep.subr.bf16.mxu0 0
    %1014 = vmatpush2.bf16.msra.mxu0 0
    %1015 = vmatprep.subr.bf16.mxu0 0
    %1016 = vmatpush2.bf16.msra.mxu0 0
    %1017 = vmatprep.subr.bf16.mxu0 0
    %1018 = vmatpush2.bf16.msra.mxu0 0
    %1019 = vmatprep.subr.bf16.mxu0 0
    %1020 = vmatpush2.bf16.msra.mxu0 0
    %1021 = vmatprep.mubr.bf16.mxu0 0
    %1022 = vmatmul.mubr.bf16.gmra.mxu0 %v987
    %v1023 = vpop.f32.mrf.mxu0
    %v1024 = vadd.f32 %v959, %v1023
    %v1025 = vpop.f32.mrf.mxu0
    %v1026 = vpop.f32.mrf.mxu0
    %v1027 = vadd.f32 %v959, %v1026
    %v1028 = vpop.f32.mrf.mxu0
    %1029 = vdwg.mxu0
    %v1030 = vadd.f32 %v857, %v1024
    %v1031 = vadd.f32 %v858, %v1027
    %v1032 = vld [vmem:[#allocation11] sm:$0x1]
    %v1033 = vld [vmem:[%s13] sm:$0x1]
    %v1034 = vsel %vm195, %v1030, 0.0
    %1035 = vadd.xlane.f32.xlu0 %v1034
    %v1036 = vpop.xlane.xlu0 %1035
    %v1037 = vsel %vm195, %v1031, 0.0
    %1038 = vadd.xlane.f32.xlu0 %v1037
    %v1039 = vpop.xlane.xlu0 %1038
    %v1040 = vmul.f32 %v1036, %v822
    %v1041 = vmul.f32 %v1039, %v822
    %v1042 = vsub.f32 %v1030, %v1040
    %v1043 = vsub.f32 %v1031, %v1041
    %v1044 = vmul.f32 %v1042, %v1042
    %v1045 = vmul.f32 %v1043, %v1043
    %v1046 = vsel %vm195, %v1044, 0.0
    %1047 = vadd.xlane.f32.xlu0 %v1046
    %v1048 = vpop.xlane.xlu0 %1047
    %v1049 = vsel %vm195, %v1045, 0.0
    %1050 = vadd.xlane.f32.xlu0 %v1049
    %v1051 = vpop.xlane.xlu0 %1050
    %v1052 = vmul.f32 %v1048, %v822
    %v1053 = vmul.f32 %v1051, %v822
    %v1054 = vadd.f32 %v1052, 1e-05
    %v1055 = vadd.f32 %v1053, 1e-05
    %v1056 = vrsqrt.pop %v1054
    %v1057 = vrsqrt.pop %v1055
    %v1058 = vmul.f32 %v1042, %v1056
    %v1059 = vmul.f32 %v1043, %v1057
    %v1061 = vlaneseq
    %v1062 = vshrl.u32 %v1061, 7
    %v1063 = vsub.s32 0, %v1062
    %v1064 = vrot.slane %v1032, %v1063
    %v1066 = vmul.f32 %v1058, %v1064
    %v1067 = vmul.f32 %v1059, %v1064
    %v1069 = vlaneseq
    %v1070 = vshrl.u32 %v1069, 7
    %v1071 = vsub.s32 0, %v1070
    %v1072 = vrot.slane %v1033, %v1071
    %v1074 = vadd.f32 %v1066, %v1072
    %v1075 = vadd.f32 %v1067, %v1072
    %v1076 = vpack.c.bf16 %v1075, %v1074
    %s1077 = scalar_lea.vmem %s2, 16
    %v1078 = vld [vmem:[%s1077] sm:$0xf]
    %v1079 = vld [vmem:[%s1077 + $0x4] sm:$0xf]
    %v1080 = vld [vmem:[%s1077 + $0x8] sm:$0xf]
    %v1081 = vld [vmem:[%s1077 + $0xc] sm:$0xf]
    %s1082 = scalar_lea.vmem %s3, 1
    %v1083 = vld [vmem:[%s1082] sm:$0x1]
    %v1085 = vlaneseq
    %v1086 = vshrl.u32 %v1085, 7
    %v1087 = vsub.s32 0, %v1086
    %v1088 = vrot.slane %v1083, %v1087
    %v1094 = vunpack.c.l.b16 %v1078
    %v1095 = vunpack.c.l.b16 %v1079
    %v1096 = vunpack.c.l.b16 %v1080
    %v1097 = vunpack.c.l.b16 %v1081
    %v1098 = vpack.c.b16 %v1095, %v1094
    %v1099 = vpack.c.b16 %v1097, %v1096
    %v1103 = vsel %vm195, %v1076, 0
    %1105 = vmatprep.subr.bf16.mxu0 0
    %1106 = vmatpush1.bf16.msra.mxu0 0
    %1107 = vmatprep.subr.bf16.mxu0 0
    %1108 = vmatpush1.bf16.msra.mxu0 0
    %1109 = vmatprep.subr.bf16.mxu0 0
    %1110 = vmatpush1.bf16.msra.mxu0 0
    %1111 = vmatprep.subr.bf16.mxu0 0
    %1112 = vmatpush1.bf16.msra.mxu0 0
    %1113 = vmatprep.subr.bf16.mxu0 0
    %1114 = vmatpush1.bf16.msra.mxu0 0
    %1115 = vmatprep.subr.bf16.mxu0 0
    %1116 = vmatpush1.bf16.msra.mxu0 0
    %1117 = vmatprep.subr.bf16.mxu0 0
    %1118 = vmatpush1.bf16.msra.mxu0 %v1099
    %1119 = vmatprep.subr.bf16.mxu0 0
    %1120 = vmatpush1.bf16.msra.mxu0 %v1098
    %1121 = vmatprep.subr.bf16.mxu0 0
    %1122 = vmatpush2.bf16.msra.mxu0 0
    %1123 = vmatprep.subr.bf16.mxu0 0
    %1124 = vmatpush2.bf16.msra.mxu0 0
    %1125 = vmatprep.subr.bf16.mxu0 0
    %1126 = vmatpush2.bf16.msra.mxu0 0
    %1127 = vmatprep.subr.bf16.mxu0 0
    %1128 = vmatpush2.bf16.msra.mxu0 0
    %1129 = vmatprep.subr.bf16.mxu0 0
    %1130 = vmatpush2.bf16.msra.mxu0 0
    %1131 = vmatprep.subr.bf16.mxu0 0
    %1132 = vmatpush2.bf16.msra.mxu0 0
    %1133 = vmatprep.subr.bf16.mxu0 0
    %1134 = vmatpush2.bf16.msra.mxu0 0
    %1135 = vmatprep.subr.bf16.mxu0 0
    %1136 = vmatpush2.bf16.msra.mxu0 0
    %1137 = vmatprep.mubr.bf16.mxu0 0
    %1138 = vmatmul.mubr.bf16.gmra.mxu0 %v1103
    %v1139 = vpop.f32.mrf.mxu0
    %v1140 = vadd.f32 %v1088, %v1139
    %v1141 = vpop.f32.mrf.mxu0
    %v1142 = vpop.f32.mrf.mxu0
    %v1143 = vadd.f32 %v1088, %v1142
    %v1144 = vpop.f32.mrf.mxu0
    %1145 = vdwg.mxu0
    %s1146 = scalar_lea.vmem [#allocation2], 1
    %v1147 = vld [vmem:[%s1146] sm:$0x1]
    %v1149 = vlaneseq
    %v1150 = vshrl.u32 %v1149, 7
    %v1151 = vsub.s32 0, %v1150
    %v1152 = vrot.slane %v1147, %v1151
    %v1154 = vadd.f32 %v1152, 0.0
    %v1155 = vpack.c.bf16 %v1140, %v1140
    %v1156 = vpack.c.bf16 %v1143, %v1143
    %1158 = vrot.lane.b32.xlu0 %v1155, 96
    %v1159 = vpop.permute.xlu0 %1158
    %v1161 = vsel %vm263, %v1155, 0
    %v1164 = vsel %vm263, %v1159, 0
    %1166 = vmatprep.subr.bf16.mxu0 0
    %1167 = vmatpush1.bf16.xpose.msra.mxu0 0
    %1168 = vmatprep.subr.bf16.mxu0 0
    %1169 = vmatpush1.bf16.xpose.msra.mxu0 0
    %1170 = vmatprep.subr.bf16.mxu0 0
    %1171 = vmatpush1.bf16.xpose.msra.mxu0 0
    %1172 = vmatprep.subr.bf16.mxu0 0
    %1173 = vmatpush1.bf16.xpose.msra.mxu0 0
    %1174 = vmatprep.subr.bf16.mxu0 0
    %1175 = vmatpush1.bf16.xpose.msra.mxu0 0
    %1176 = vmatprep.subr.bf16.mxu0 0
    %1177 = vmatpush1.bf16.xpose.msra.mxu0 0
    %1178 = vmatprep.subr.bf16.mxu0 0
    %1179 = vmatpush1.bf16.xpose.msra.mxu0 0
    %1180 = vmatprep.subr.bf16.mxu0 0
    %1181 = vmatpush1.bf16.xpose.msra.mxu0 %v1164
    %1182 = vmatprep.subr.bf16.mxu0 0
    %1183 = vmatpush2.bf16.xpose.msra.mxu0 0
    %1184 = vmatprep.subr.bf16.mxu0 0
    %1185 = vmatpush2.bf16.xpose.msra.mxu0 0
    %1186 = vmatprep.subr.bf16.mxu0 0
    %1187 = vmatpush2.bf16.xpose.msra.mxu0 0
    %1188 = vmatprep.subr.bf16.mxu0 0
    %1189 = vmatpush2.bf16.xpose.msra.mxu0 0
    %1190 = vmatprep.subr.bf16.mxu0 0
    %1191 = vmatpush2.bf16.xpose.msra.mxu0 0
    %1192 = vmatprep.subr.bf16.mxu0 0
    %1193 = vmatpush2.bf16.xpose.msra.mxu0 0
    %1194 = vmatprep.subr.bf16.mxu0 0
    %1195 = vmatpush2.bf16.xpose.msra.mxu0 0
    %1196 = vmatprep.subr.bf16.mxu0 0
    %1197 = vmatpush2.bf16.xpose.msra.mxu0 0
    %1198 = vmatprep.mubr.bf16.mxu0 0
    %1199 = vmatmul.mubr.bf16.gmra.mxu0 %v1161
    %v1200 = vpop.f32.mrf.mxu0
    %v1201 = vadd.f32 %v253, %v1200
    %v1202 = vpop.f32.mrf.mxu0
    %v1203 = vpop.f32.mrf.mxu0
    %v1204 = vpop.f32.mrf.mxu0
    %1205 = vdwg.mxu0
    %1207 = vrot.lane.b32.xlu0 %v1156, 96
    %v1208 = vpop.permute.xlu0 %1207
    %v1210 = vsel %vm263, %v1156, 0
    %v1213 = vsel %vm263, %v1208, 0
    %1215 = vmatprep.subr.bf16.mxu0 0
    %1216 = vmatpush1.bf16.xpose.msra.mxu0 0
    %1217 = vmatprep.subr.bf16.mxu0 0
    %1218 = vmatpush1.bf16.xpose.msra.mxu0 0
    %1219 = vmatprep.subr.bf16.mxu0 0
    %1220 = vmatpush1.bf16.xpose.msra.mxu0 0
    %1221 = vmatprep.subr.bf16.mxu0 0
    %1222 = vmatpush1.bf16.xpose.msra.mxu0 0
    %1223 = vmatprep.subr.bf16.mxu0 0
    %1224 = vmatpush1.bf16.xpose.msra.mxu0 0
    %1225 = vmatprep.subr.bf16.mxu0 0
    %1226 = vmatpush1.bf16.xpose.msra.mxu0 0
    %1227 = vmatprep.subr.bf16.mxu0 0
    %1228 = vmatpush1.bf16.xpose.msra.mxu0 0
    %1229 = vmatprep.subr.bf16.mxu0 0
    %1230 = vmatpush1.bf16.xpose.msra.mxu0 %v1213
    %1231 = vmatprep.subr.bf16.mxu0 0
    %1232 = vmatpush2.bf16.xpose.msra.mxu0 0
    %1233 = vmatprep.subr.bf16.mxu0 0
    %1234 = vmatpush2.bf16.xpose.msra.mxu0 0
    %1235 = vmatprep.subr.bf16.mxu0 0
    %1236 = vmatpush2.bf16.xpose.msra.mxu0 0
    %1237 = vmatprep.subr.bf16.mxu0 0
    %1238 = vmatpush2.bf16.xpose.msra.mxu0 0
    %1239 = vmatprep.subr.bf16.mxu0 0
    %1240 = vmatpush2.bf16.xpose.msra.mxu0 0
    %1241 = vmatprep.subr.bf16.mxu0 0
    %1242 = vmatpush2.bf16.xpose.msra.mxu0 0
    %1243 = vmatprep.subr.bf16.mxu0 0
    %1244 = vmatpush2.bf16.xpose.msra.mxu0 0
    %1245 = vmatprep.subr.bf16.mxu0 0
    %1246 = vmatpush2.bf16.xpose.msra.mxu0 0
    %1247 = vmatprep.mubr.bf16.mxu0 0
    %1248 = vmatmul.mubr.bf16.gmra.mxu0 %v1210
    %v1249 = vpop.f32.mrf.mxu0
    %v1250 = vadd.f32 %v257, %v1249
    %v1251 = vpop.f32.mrf.mxu0
    %v1252 = vpop.f32.mrf.mxu0
    %v1253 = vpop.f32.mrf.mxu0
    %1254 = vdwg.mxu0
    %v1255 = vsel %vm359, %v1201, -inf
    %1256 = vmax.xlane.f32.xlu0 %v1255
    %v1257 = vpop.xlane.xlu0 %1256
    %v1258 = vsel %vm359, %v1250, -inf
    %1259 = vmax.xlane.f32.xlu0 %v1258
    %v1260 = vpop.xlane.xlu0 %1259
    %v1261 = vsub.f32 %v1201, %v1257
    %v1262 = vsub.f32 %v1250, %v1260
    %v1263 = vmul.f32 %v1261, 1.442695
    %v1264 = vpow.pop %v1263
    %v1265 = vmul.f32 %v1262, 1.442695
    %v1266 = vpow.pop %v1265
    %v1267 = vsel %vm359, %v1264, 0.0
    %1268 = vadd.xlane.f32.xlu0 %v1267
    %v1269 = vpop.xlane.xlu0 %1268
    %v1270 = vsel %vm359, %v1266, 0.0
    %1271 = vadd.xlane.f32.xlu0 %v1270
    %v1272 = vpop.xlane.xlu0 %1271
    %v1273 = vrcp.pop %v1269
    %v1274 = vrcp.pop %v1272
    %v1275 = vmul.f32 %v1264, %v1273
    %v1276 = vmul.f32 %v1266, %v1274
    %v1277 = vpack.c.bf16 %v1275, %v1275
    %v1278 = vpack.c.bf16 %v1276, %v1276
    %1279 = vrot.lane.b32.xlu0 %v1155, 64
    %v1280 = vpop.permute.xlu0 %1279
    %v1282 = vsel %vm359, %v1277, 0
    %v1285 = vsel %vm389, %v1280, 0
    %1287 = vmatprep.subr.bf16.mxu0 0
    %1288 = vmatpush1.bf16.msra.mxu0 0
    %1289 = vmatprep.subr.bf16.mxu0 0
    %1290 = vmatpush1.bf16.msra.mxu0 0
    %1291 = vmatprep.subr.bf16.mxu0 0
    %1292 = vmatpush1.bf16.msra.mxu0 0
    %1293 = vmatprep.subr.bf16.mxu0 0
    %1294 = vmatpush1.bf16.msra.mxu0 0
    %1295 = vmatprep.subr.bf16.mxu0 0
    %1296 = vmatpush1.bf16.msra.mxu0 0
    %1297 = vmatprep.subr.bf16.mxu0 0
    %1298 = vmatpush1.bf16.msra.mxu0 0
    %1299 = vmatprep.subr.bf16.mxu0 0
    %1300 = vmatpush1.bf16.msra.mxu0 0
    %1301 = vmatprep.subr.bf16.mxu0 0
    %1302 = vmatpush1.bf16.msra.mxu0 %v1285
    %1303 = vmatprep.subr.bf16.mxu0 0
    %1304 = vmatpush2.bf16.msra.mxu0 0
    %1305 = vmatprep.subr.bf16.mxu0 0
    %1306 = vmatpush2.bf16.msra.mxu0 0
    %1307 = vmatprep.subr.bf16.mxu0 0
    %1308 = vmatpush2.bf16.msra.mxu0 0
    %1309 = vmatprep.subr.bf16.mxu0 0
    %1310 = vmatpush2.bf16.msra.mxu0 0
    %1311 = vmatprep.subr.bf16.mxu0 0
    %1312 = vmatpush2.bf16.msra.mxu0 0
    %1313 = vmatprep.subr.bf16.mxu0 0
    %1314 = vmatpush2.bf16.msra.mxu0 0
    %1315 = vmatprep.subr.bf16.mxu0 0
    %1316 = vmatpush2.bf16.msra.mxu0 0
    %1317 = vmatprep.subr.bf16.mxu0 0
    %1318 = vmatpush2.bf16.msra.mxu0 0
    %1319 = vmatprep.mubr.bf16.mxu0 0
    %1320 = vmatmul.mubr.bf16.gmra.mxu0 %v1282
    %v1321 = vpop.f32.mrf.mxu0
    %v1322 = vadd.f32 0.0, %v1321
    %v1323 = vpop.f32.mrf.mxu0
    %v1324 = vpop.f32.mrf.mxu0
    %v1325 = vpop.f32.mrf.mxu0
    %1326 = vdwg.mxu0
    %1327 = vrot.lane.b32.xlu0 %v1156, 64
    %v1328 = vpop.permute.xlu0 %1327
    %v1330 = vsel %vm359, %v1278, 0
    %v1333 = vsel %vm389, %v1328, 0
    %1335 = vmatprep.subr.bf16.mxu0 0
    %1336 = vmatpush1.bf16.msra.mxu0 0
    %1337 = vmatprep.subr.bf16.mxu0 0
    %1338 = vmatpush1.bf16.msra.mxu0 0
    %1339 = vmatprep.subr.bf16.mxu0 0
    %1340 = vmatpush1.bf16.msra.mxu0 0
    %1341 = vmatprep.subr.bf16.mxu0 0
    %1342 = vmatpush1.bf16.msra.mxu0 0
    %1343 = vmatprep.subr.bf16.mxu0 0
    %1344 = vmatpush1.bf16.msra.mxu0 0
    %1345 = vmatprep.subr.bf16.mxu0 0
    %1346 = vmatpush1.bf16.msra.mxu0 0
    %1347 = vmatprep.subr.bf16.mxu0 0
    %1348 = vmatpush1.bf16.msra.mxu0 0
    %1349 = vmatprep.subr.bf16.mxu0 0
    %1350 = vmatpush1.bf16.msra.mxu0 %v1333
    %1351 = vmatprep.subr.bf16.mxu0 0
    %1352 = vmatpush2.bf16.msra.mxu0 0
    %1353 = vmatprep.subr.bf16.mxu0 0
    %1354 = vmatpush2.bf16.msra.mxu0 0
    %1355 = vmatprep.subr.bf16.mxu0 0
    %1356 = vmatpush2.bf16.msra.mxu0 0
    %1357 = vmatprep.subr.bf16.mxu0 0
    %1358 = vmatpush2.bf16.msra.mxu0 0
    %1359 = vmatprep.subr.bf16.mxu0 0
    %1360 = vmatpush2.bf16.msra.mxu0 0
    %1361 = vmatprep.subr.bf16.mxu0 0
    %1362 = vmatpush2.bf16.msra.mxu0 0
    %1363 = vmatprep.subr.bf16.mxu0 0
    %1364 = vmatpush2.bf16.msra.mxu0 0
    %1365 = vmatprep.subr.bf16.mxu0 0
    %1366 = vmatpush2.bf16.msra.mxu0 0
    %1367 = vmatprep.mubr.bf16.mxu0 0
    %1368 = vmatmul.mubr.bf16.gmra.mxu0 %v1330
    %v1369 = vpop.f32.mrf.mxu0
    %v1370 = vadd.f32 0.0, %v1369
    %v1371 = vpop.f32.mrf.mxu0
    %v1372 = vpop.f32.mrf.mxu0
    %v1373 = vpop.f32.mrf.mxu0
    %1374 = vdwg.mxu0
    %v1375 = vpack.c.bf16 %v1370, %v1322
    %s1376 = scalar_lea.vmem %s4, 16
    %v1377 = vld [vmem:[%s1376] sm:$0xf]
    %v1378 = vld [vmem:[%s1376 + $0x4] sm:$0xf]
    %v1381 = vunpack.c.l.b16 %v1377
    %v1382 = vunpack.c.l.b16 %v1378
    %v1383 = vpack.c.b16 %v1382, %v1381
    %v1386 = vsel %vm263, %v1375, 0
    %1388 = vmatprep.subr.bf16.mxu0 0
    %1389 = vmatpush1.bf16.msra.mxu0 0
    %1390 = vmatprep.subr.bf16.mxu0 0
    %1391 = vmatpush1.bf16.msra.mxu0 0
    %1392 = vmatprep.subr.bf16.mxu0 0
    %1393 = vmatpush1.bf16.msra.mxu0 0
    %1394 = vmatprep.subr.bf16.mxu0 0
    %1395 = vmatpush1.bf16.msra.mxu0 0
    %1396 = vmatprep.subr.bf16.mxu0 0
    %1397 = vmatpush1.bf16.msra.mxu0 0
    %1398 = vmatprep.subr.bf16.mxu0 0
    %1399 = vmatpush1.bf16.msra.mxu0 0
    %1400 = vmatprep.subr.bf16.mxu0 0
    %1401 = vmatpush1.bf16.msra.mxu0 0
    %1402 = vmatprep.subr.bf16.mxu0 0
    %1403 = vmatpush1.bf16.msra.mxu0 %v1383
    %1404 = vmatprep.subr.bf16.mxu0 0
    %1405 = vmatpush2.bf16.msra.mxu0 0
    %1406 = vmatprep.subr.bf16.mxu0 0
    %1407 = vmatpush2.bf16.msra.mxu0 0
    %1408 = vmatprep.subr.bf16.mxu0 0
    %1409 = vmatpush2.bf16.msra.mxu0 0
    %1410 = vmatprep.subr.bf16.mxu0 0
    %1411 = vmatpush2.bf16.msra.mxu0 0
    %1412 = vmatprep.subr.bf16.mxu0 0
    %1413 = vmatpush2.bf16.msra.mxu0 0
    %1414 = vmatprep.subr.bf16.mxu0 0
    %1415 = vmatpush2.bf16.msra.mxu0 0
    %1416 = vmatprep.subr.bf16.mxu0 0
    %1417 = vmatpush2.bf16.msra.mxu0 0
    %1418 = vmatprep.subr.bf16.mxu0 0
    %1419 = vmatpush2.bf16.msra.mxu0 0
    %1420 = vmatprep.mubr.bf16.mxu0 0
    %1421 = vmatmul.mubr.bf16.gmra.mxu0 %v1386
    %v1422 = vpop.f32.mrf.mxu0
    %v1423 = vadd.f32 0.0, %v1422
    %v1424 = vpop.f32.mrf.mxu0
    %v1425 = vpop.f32.mrf.mxu0
    %v1426 = vadd.f32 0.0, %v1425
    %v1427 = vpop.f32.mrf.mxu0
    %1428 = vdwg.mxu0
    %v1429 = vadd.f32 %v1154, %v1423
    %v1430 = vadd.f32 %v1154, %v1426
    %1431 = vrot.lane.b32.xlu0 %v1155, 112
    %v1432 = vpop.permute.xlu0 %1431
    %1433 = vrot.lane.b32.xlu0 %v1155, 80
    %v1434 = vpop.permute.xlu0 %1433
    %v1436 = vsel %vm263, %v1432, 0
    %v1439 = vsel %vm263, %v1434, 0
    %1441 = vmatprep.subr.bf16.mxu0 0
    %1442 = vmatpush1.bf16.xpose.msra.mxu0 0
    %1443 = vmatprep.subr.bf16.mxu0 0
    %1444 = vmatpush1.bf16.xpose.msra.mxu0 0
    %1445 = vmatprep.subr.bf16.mxu0 0
    %1446 = vmatpush1.bf16.xpose.msra.mxu0 0
    %1447 = vmatprep.subr.bf16.mxu0 0
    %1448 = vmatpush1.bf16.xpose.msra.mxu0 0
    %1449 = vmatprep.subr.bf16.mxu0 0
    %1450 = vmatpush1.bf16.xpose.msra.mxu0 0
    %1451 = vmatprep.subr.bf16.mxu0 0
    %1452 = vmatpush1.bf16.xpose.msra.mxu0 0
    %1453 = vmatprep.subr.bf16.mxu0 0
    %1454 = vmatpush1.bf16.xpose.msra.mxu0 0
    %1455 = vmatprep.subr.bf16.mxu0 0
    %1456 = vmatpush1.bf16.xpose.msra.mxu0 %v1439
    %1457 = vmatprep.subr.bf16.mxu0 0
    %1458 = vmatpush2.bf16.xpose.msra.mxu0 0
    %1459 = vmatprep.subr.bf16.mxu0 0
    %1460 = vmatpush2.bf16.xpose.msra.mxu0 0
    %1461 = vmatprep.subr.bf16.mxu0 0
    %1462 = vmatpush2.bf16.xpose.msra.mxu0 0
    %1463 = vmatprep.subr.bf16.mxu0 0
    %1464 = vmatpush2.bf16.xpose.msra.mxu0 0
    %1465 = vmatprep.subr.bf16.mxu0 0
    %1466 = vmatpush2.bf16.xpose.msra.mxu0 0
    %1467 = vmatprep.subr.bf16.mxu0 0
    %1468 = vmatpush2.bf16.xpose.msra.mxu0 0
    %1469 = vmatprep.subr.bf16.mxu0 0
    %1470 = vmatpush2.bf16.xpose.msra.mxu0 0
    %1471 = vmatprep.subr.bf16.mxu0 0
    %1472 = vmatpush2.bf16.xpose.msra.mxu0 0
    %1473 = vmatprep.mubr.bf16.mxu0 0
    %1474 = vmatmul.mubr.bf16.gmra.mxu0 %v1436
    %v1475 = vpop.f32.mrf.mxu0
    %v1476 = vadd.f32 %v253, %v1475
    %v1477 = vpop.f32.mrf.mxu0
    %v1478 = vpop.f32.mrf.mxu0
    %v1479 = vpop.f32.mrf.mxu0
    %1480 = vdwg.mxu0
    %1481 = vrot.lane.b32.xlu0 %v1156, 112
    %v1482 = vpop.permute.xlu0 %1481
    %1483 = vrot.lane.b32.xlu0 %v1156, 80
    %v1484 = vpop.permute.xlu0 %1483
    %v1486 = vsel %vm263, %v1482, 0
    %v1489 = vsel %vm263, %v1484, 0
    %1491 = vmatprep.subr.bf16.mxu0 0
    %1492 = vmatpush1.bf16.xpose.msra.mxu0 0
    %1493 = vmatprep.subr.bf16.mxu0 0
    %1494 = vmatpush1.bf16.xpose.msra.mxu0 0
    %1495 = vmatprep.subr.bf16.mxu0 0
    %1496 = vmatpush1.bf16.xpose.msra.mxu0 0
    %1497 = vmatprep.subr.bf16.mxu0 0
    %1498 = vmatpush1.bf16.xpose.msra.mxu0 0
    %1499 = vmatprep.subr.bf16.mxu0 0
    %1500 = vmatpush1.bf16.xpose.msra.mxu0 0
    %1501 = vmatprep.subr.bf16.mxu0 0
    %1502 = vmatpush1.bf16.xpose.msra.mxu0 0
    %1503 = vmatprep.subr.bf16.mxu0 0
    %1504 = vmatpush1.bf16.xpose.msra.mxu0 0
    %1505 = vmatprep.subr.bf16.mxu0 0
    %1506 = vmatpush1.bf16.xpose.msra.mxu0 %v1489
    %1507 = vmatprep.subr.bf16.mxu0 0
    %1508 = vmatpush2.bf16.xpose.msra.mxu0 0
    %1509 = vmatprep.subr.bf16.mxu0 0
    %1510 = vmatpush2.bf16.xpose.msra.mxu0 0
    %1511 = vmatprep.subr.bf16.mxu0 0
    %1512 = vmatpush2.bf16.xpose.msra.mxu0 0
    %1513 = vmatprep.subr.bf16.mxu0 0
    %1514 = vmatpush2.bf16.xpose.msra.mxu0 0
    %1515 = vmatprep.subr.bf16.mxu0 0
    %1516 = vmatpush2.bf16.xpose.msra.mxu0 0
    %1517 = vmatprep.subr.bf16.mxu0 0
    %1518 = vmatpush2.bf16.xpose.msra.mxu0 0
    %1519 = vmatprep.subr.bf16.mxu0 0
    %1520 = vmatpush2.bf16.xpose.msra.mxu0 0
    %1521 = vmatprep.subr.bf16.mxu0 0
    %1522 = vmatpush2.bf16.xpose.msra.mxu0 0
    %1523 = vmatprep.mubr.bf16.mxu0 0
    %1524 = vmatmul.mubr.bf16.gmra.mxu0 %v1486
    %v1525 = vpop.f32.mrf.mxu0
    %v1526 = vadd.f32 %v257, %v1525
    %v1527 = vpop.f32.mrf.mxu0
    %v1528 = vpop.f32.mrf.mxu0
    %v1529 = vpop.f32.mrf.mxu0
    %1530 = vdwg.mxu0
    %v1531 = vsel %vm359, %v1476, -inf
    %1532 = vmax.xlane.f32.xlu0 %v1531
    %v1533 = vpop.xlane.xlu0 %1532
    %v1534 = vsel %vm359, %v1526, -inf
    %1535 = vmax.xlane.f32.xlu0 %v1534
    %v1536 = vpop.xlane.xlu0 %1535
    %v1537 = vsub.f32 %v1476, %v1533
    %v1538 = vsub.f32 %v1526, %v1536
    %v1539 = vmul.f32 %v1537, 1.442695
    %v1540 = vpow.pop %v1539
    %v1541 = vmul.f32 %v1538, 1.442695
    %v1542 = vpow.pop %v1541
    %v1543 = vsel %vm359, %v1540, 0.0
    %1544 = vadd.xlane.f32.xlu0 %v1543
    %v1545 = vpop.xlane.xlu0 %1544
    %v1546 = vsel %vm359, %v1542, 0.0
    %1547 = vadd.xlane.f32.xlu0 %v1546
    %v1548 = vpop.xlane.xlu0 %1547
    %v1549 = vrcp.pop %v1545
    %v1550 = vrcp.pop %v1548
    %v1551 = vmul.f32 %v1540, %v1549
    %v1552 = vmul.f32 %v1542, %v1550
    %v1553 = vpack.c.bf16 %v1551, %v1551
    %v1554 = vpack.c.bf16 %v1552, %v1552
    %1555 = vrot.lane.b32.xlu0 %v1155, 48
    %v1556 = vpop.permute.xlu0 %1555
    %v1558 = vsel %vm359, %v1553, 0
    %v1561 = vsel %vm389, %v1556, 0
    %1563 = vmatprep.subr.bf16.mxu0 0
    %1564 = vmatpush1.bf16.msra.mxu0 0
    %1565 = vmatprep.subr.bf16.mxu0 0
    %1566 = vmatpush1.bf16.msra.mxu0 0
    %1567 = vmatprep.subr.bf16.mxu0 0
    %1568 = vmatpush1.bf16.msra.mxu0 0
    %1569 = vmatprep.subr.bf16.mxu0 0
    %1570 = vmatpush1.bf16.msra.mxu0 0
    %1571 = vmatprep.subr.bf16.mxu0 0
    %1572 = vmatpush1.bf16.msra.mxu0 0
    %1573 = vmatprep.subr.bf16.mxu0 0
    %1574 = vmatpush1.bf16.msra.mxu0 0
    %1575 = vmatprep.subr.bf16.mxu0 0
    %1576 = vmatpush1.bf16.msra.mxu0 0
    %1577 = vmatprep.subr.bf16.mxu0 0
    %1578 = vmatpush1.bf16.msra.mxu0 %v1561
    %1579 = vmatprep.subr.bf16.mxu0 0
    %1580 = vmatpush2.bf16.msra.mxu0 0
    %1581 = vmatprep.subr.bf16.mxu0 0
    %1582 = vmatpush2.bf16.msra.mxu0 0
    %1583 = vmatprep.subr.bf16.mxu0 0
    %1584 = vmatpush2.bf16.msra.mxu0 0
    %1585 = vmatprep.subr.bf16.mxu0 0
    %1586 = vmatpush2.bf16.msra.mxu0 0
    %1587 = vmatprep.subr.bf16.mxu0 0
    %1588 = vmatpush2.bf16.msra.mxu0 0
    %1589 = vmatprep.subr.bf16.mxu0 0
    %1590 = vmatpush2.bf16.msra.mxu0 0
    %1591 = vmatprep.subr.bf16.mxu0 0
    %1592 = vmatpush2.bf16.msra.mxu0 0
    %1593 = vmatprep.subr.bf16.mxu0 0
    %1594 = vmatpush2.bf16.msra.mxu0 0
    %1595 = vmatprep.mubr.bf16.mxu0 0
    %1596 = vmatmul.mubr.bf16.gmra.mxu0 %v1558
    %v1597 = vpop.f32.mrf.mxu0
    %v1598 = vadd.f32 0.0, %v1597
    %v1599 = vpop.f32.mrf.mxu0
    %v1600 = vpop.f32.mrf.mxu0
    %v1601 = vpop.f32.mrf.mxu0
    %1602 = vdwg.mxu0
    %1603 = vrot.lane.b32.xlu0 %v1156, 48
    %v1604 = vpop.permute.xlu0 %1603
    %v1606 = vsel %vm359, %v1554, 0
    %v1609 = vsel %vm389, %v1604, 0
    %1611 = vmatprep.subr.bf16.mxu0 0
    %1612 = vmatpush1.bf16.msra.mxu0 0
    %1613 = vmatprep.subr.bf16.mxu0 0
    %1614 = vmatpush1.bf16.msra.mxu0 0
    %1615 = vmatprep.subr.bf16.mxu0 0
    %1616 = vmatpush1.bf16.msra.mxu0 0
    %1617 = vmatprep.subr.bf16.mxu0 0
    %1618 = vmatpush1.bf16.msra.mxu0 0
    %1619 = vmatprep.subr.bf16.mxu0 0
    %1620 = vmatpush1.bf16.msra.mxu0 0
    %1621 = vmatprep.subr.bf16.mxu0 0
    %1622 = vmatpush1.bf16.msra.mxu0 0
    %1623 = vmatprep.subr.bf16.mxu0 0
    %1624 = vmatpush1.bf16.msra.mxu0 0
    %1625 = vmatprep.subr.bf16.mxu0 0
    %1626 = vmatpush1.bf16.msra.mxu0 %v1609
    %1627 = vmatprep.subr.bf16.mxu0 0
    %1628 = vmatpush2.bf16.msra.mxu0 0
    %1629 = vmatprep.subr.bf16.mxu0 0
    %1630 = vmatpush2.bf16.msra.mxu0 0
    %1631 = vmatprep.subr.bf16.mxu0 0
    %1632 = vmatpush2.bf16.msra.mxu0 0
    %1633 = vmatprep.subr.bf16.mxu0 0
    %1634 = vmatpush2.bf16.msra.mxu0 0
    %1635 = vmatprep.subr.bf16.mxu0 0
    %1636 = vmatpush2.bf16.msra.mxu0 0
    %1637 = vmatprep.subr.bf16.mxu0 0
    %1638 = vmatpush2.bf16.msra.mxu0 0
    %1639 = vmatprep.subr.bf16.mxu0 0
    %1640 = vmatpush2.bf16.msra.mxu0 0
    %1641 = vmatprep.subr.bf16.mxu0 0
    %1642 = vmatpush2.bf16.msra.mxu0 0
    %1643 = vmatprep.mubr.bf16.mxu0 0
    %1644 = vmatmul.mubr.bf16.gmra.mxu0 %v1606
    %v1645 = vpop.f32.mrf.mxu0
    %v1646 = vadd.f32 0.0, %v1645
    %v1647 = vpop.f32.mrf.mxu0
    %v1648 = vpop.f32.mrf.mxu0
    %v1649 = vpop.f32.mrf.mxu0
    %1650 = vdwg.mxu0
    %v1651 = vpack.c.bf16 %v1646, %v1598
    %s1652 = scalar_lea.vmem %s4, 24
    %v1653 = vld [vmem:[%s1652] sm:$0xf]
    %v1654 = vld [vmem:[%s1652 + $0x4] sm:$0xf]
    %v1657 = vunpack.c.l.b16 %v1653
    %v1658 = vunpack.c.l.b16 %v1654
    %v1659 = vpack.c.b16 %v1658, %v1657
    %v1662 = vsel %vm263, %v1651, 0
    %1664 = vmatprep.subr.bf16.mxu0 0
    %1665 = vmatpush1.bf16.msra.mxu0 0
    %1666 = vmatprep.subr.bf16.mxu0 0
    %1667 = vmatpush1.bf16.msra.mxu0 0
    %1668 = vmatprep.subr.bf16.mxu0 0
    %1669 = vmatpush1.bf16.msra.mxu0 0
    %1670 = vmatprep.subr.bf16.mxu0 0
    %1671 = vmatpush1.bf16.msra.mxu0 0
    %1672 = vmatprep.subr.bf16.mxu0 0
    %1673 = vmatpush1.bf16.msra.mxu0 0
    %1674 = vmatprep.subr.bf16.mxu0 0
    %1675 = vmatpush1.bf16.msra.mxu0 0
    %1676 = vmatprep.subr.bf16.mxu0 0
    %1677 = vmatpush1.bf16.msra.mxu0 0
    %1678 = vmatprep.subr.bf16.mxu0 0
    %1679 = vmatpush1.bf16.msra.mxu0 %v1659
    %1680 = vmatprep.subr.bf16.mxu0 0
    %1681 = vmatpush2.bf16.msra.mxu0 0
    %1682 = vmatprep.subr.bf16.mxu0 0
    %1683 = vmatpush2.bf16.msra.mxu0 0
    %1684 = vmatprep.subr.bf16.mxu0 0
    %1685 = vmatpush2.bf16.msra.mxu0 0
    %1686 = vmatprep.subr.bf16.mxu0 0
    %1687 = vmatpush2.bf16.msra.mxu0 0
    %1688 = vmatprep.subr.bf16.mxu0 0
    %1689 = vmatpush2.bf16.msra.mxu0 0
    %1690 = vmatprep.subr.bf16.mxu0 0
    %1691 = vmatpush2.bf16.msra.mxu0 0
    %1692 = vmatprep.subr.bf16.mxu0 0
    %1693 = vmatpush2.bf16.msra.mxu0 0
    %1694 = vmatprep.subr.bf16.mxu0 0
    %1695 = vmatpush2.bf16.msra.mxu0 0
    %1696 = vmatprep.mubr.bf16.mxu0 0
    %1697 = vmatmul.mubr.bf16.gmra.mxu0 %v1662
    %v1698 = vpop.f32.mrf.mxu0
    %v1699 = vadd.f32 0.0, %v1698
    %v1700 = vpop.f32.mrf.mxu0
    %v1701 = vpop.f32.mrf.mxu0
    %v1702 = vadd.f32 0.0, %v1701
    %v1703 = vpop.f32.mrf.mxu0
    %1704 = vdwg.mxu0
    %v1705 = vadd.f32 %v1429, %v1699
    %v1706 = vadd.f32 %v1430, %v1702
    %v1707 = vadd.f32 %v1074, %v1705
    %v1708 = vadd.f32 %v1075, %v1706
    %s1709 = scalar_lea.vmem [#allocation5], 1
    %v1710 = vld [vmem:[%s1709] sm:$0x1]
    %s1711 = scalar_lea.vmem [#allocation7], 1
    %v1712 = vld [vmem:[%s1711] sm:$0x1]
    %v1713 = vsel %vm195, %v1707, 0.0
    %1714 = vadd.xlane.f32.xlu0 %v1713
    %v1715 = vpop.xlane.xlu0 %1714
    %v1716 = vsel %vm195, %v1708, 0.0
    %1717 = vadd.xlane.f32.xlu0 %v1716
    %v1718 = vpop.xlane.xlu0 %1717
    %v1719 = vmul.f32 %v1715, %v822
    %v1720 = vmul.f32 %v1718, %v822
    %v1721 = vsub.f32 %v1707, %v1719
    %v1722 = vsub.f32 %v1708, %v1720
    %v1723 = vmul.f32 %v1721, %v1721
    %v1724 = vmul.f32 %v1722, %v1722
    %v1725 = vsel %vm195, %v1723, 0.0
    %1726 = vadd.xlane.f32.xlu0 %v1725
    %v1727 = vpop.xlane.xlu0 %1726
    %v1728 = vsel %vm195, %v1724, 0.0
    %1729 = vadd.xlane.f32.xlu0 %v1728
    %v1730 = vpop.xlane.xlu0 %1729
    %v1731 = vmul.f32 %v1727, %v822
    %v1732 = vmul.f32 %v1730, %v822
    %v1733 = vadd.f32 %v1731, 1e-05
    %v1734 = vadd.f32 %v1732, 1e-05
    %v1735 = vrsqrt.pop %v1733
    %v1736 = vrsqrt.pop %v1734
    %v1737 = vmul.f32 %v1721, %v1735
    %v1738 = vmul.f32 %v1722, %v1736
    %v1740 = vlaneseq
    %v1741 = vshrl.u32 %v1740, 7
    %v1742 = vsub.s32 0, %v1741
    %v1743 = vrot.slane %v1710, %v1742
    %v1745 = vmul.f32 %v1737, %v1743
    %v1746 = vmul.f32 %v1738, %v1743
    %v1748 = vlaneseq
    %v1749 = vshrl.u32 %v1748, 7
    %v1750 = vsub.s32 0, %v1749
    %v1751 = vrot.slane %v1712, %v1750
    %v1753 = vadd.f32 %v1745, %v1751
    %v1754 = vadd.f32 %v1746, %v1751
    %v1755 = vpack.c.bf16 %v1754, %v1753
    %s1756 = scalar_lea.vmem %s8, 16
    %v1757 = vld [vmem:[%s1756] sm:$0xf]
    %v1758 = vld [vmem:[%s1756 + $0x4] sm:$0xf]
    %v1759 = vld [vmem:[%s1756 + $0x8] sm:$0xf]
    %v1760 = vld [vmem:[%s1756 + $0xc] sm:$0xf]
    %s1761 = scalar_lea.vmem [#allocation8], 1
    %v1762 = vld [vmem:[%s1761] sm:$0x1]
    %v1764 = vlaneseq
    %v1765 = vshrl.u32 %v1764, 7
    %v1766 = vsub.s32 0, %v1765
    %v1767 = vrot.slane %v1762, %v1766
    %v1773 = vunpack.c.l.b16 %v1757
    %v1774 = vunpack.c.l.b16 %v1758
    %v1775 = vunpack.c.l.b16 %v1759
    %v1776 = vunpack.c.l.b16 %v1760
    %v1777 = vpack.c.b16 %v1774, %v1773
    %v1778 = vpack.c.b16 %v1776, %v1775
    %v1782 = vsel %vm195, %v1755, 0
    %1784 = vmatprep.subr.bf16.mxu0 0
    %1785 = vmatpush1.bf16.msra.mxu0 0
    %1786 = vmatprep.subr.bf16.mxu0 0
    %1787 = vmatpush1.bf16.msra.mxu0 0
    %1788 = vmatprep.subr.bf16.mxu0 0
    %1789 = vmatpush1.bf16.msra.mxu0 0
    %1790 = vmatprep.subr.bf16.mxu0 0
    %1791 = vmatpush1.bf16.msra.mxu0 0
    %1792 = vmatprep.subr.bf16.mxu0 0
    %1793 = vmatpush1.bf16.msra.mxu0 0
    %1794 = vmatprep.subr.bf16.mxu0 0
    %1795 = vmatpush1.bf16.msra.mxu0 0
    %1796 = vmatprep.subr.bf16.mxu0 0
    %1797 = vmatpush1.bf16.msra.mxu0 %v1778
    %1798 = vmatprep.subr.bf16.mxu0 0
    %1799 = vmatpush1.bf16.msra.mxu0 %v1777
    %1800 = vmatprep.subr.bf16.mxu0 0
    %1801 = vmatpush2.bf16.msra.mxu0 0
    %1802 = vmatprep.subr.bf16.mxu0 0
    %1803 = vmatpush2.bf16.msra.mxu0 0
    %1804 = vmatprep.subr.bf16.mxu0 0
    %1805 = vmatpush2.bf16.msra.mxu0 0
    %1806 = vmatprep.subr.bf16.mxu0 0
    %1807 = vmatpush2.bf16.msra.mxu0 0
    %1808 = vmatprep.subr.bf16.mxu0 0
    %1809 = vmatpush2.bf16.msra.mxu0 0
    %1810 = vmatprep.subr.bf16.mxu0 0
    %1811 = vmatpush2.bf16.msra.mxu0 0
    %1812 = vmatprep.subr.bf16.mxu0 0
    %1813 = vmatpush2.bf16.msra.mxu0 0
    %1814 = vmatprep.subr.bf16.mxu0 0
    %1815 = vmatpush2.bf16.msra.mxu0 0
    %1816 = vmatprep.mubr.bf16.mxu0 0
    %1817 = vmatmul.mubr.bf16.gmra.mxu0 %v1782
    %v1818 = vpop.f32.mrf.mxu0
    %v1819 = vadd.f32 %v1767, %v1818
    %v1820 = vpop.f32.mrf.mxu0
    %v1821 = vpop.f32.mrf.mxu0
    %v1822 = vadd.f32 %v1767, %v1821
    %v1823 = vpop.f32.mrf.mxu0
    %1824 = vdwg.mxu0
    %v1825 = vmul.f32 %v1819, %v1819
    %v1826 = vmul.f32 %v1822, %v1822
    %v1827 = vmul.f32 %v1819, %v1825
    %v1828 = vmul.f32 %v1822, %v1826
    %v1829 = vmul.f32 %v1827, 0.044715
    %v1830 = vmul.f32 %v1828, 0.044715
    %v1831 = vadd.f32 %v1819, %v1829
    %v1832 = vadd.f32 %v1822, %v1830
    %v1833 = vmul.f32 %v1831, 0.7978846
    %v1834 = vmul.f32 %v1832, 0.7978846
    %v1835 = vtanh.pop %v1833
    %v1836 = vtanh.pop %v1834
    %v1837 = vadd.f32 %v1835, 1.0
    %v1838 = vadd.f32 %v1836, 1.0
    %v1839 = vmul.f32 %v1837, 0.5
    %v1840 = vmul.f32 %v1838, 0.5
    %v1841 = vmul.f32 %v1819, %v1839
    %v1842 = vmul.f32 %v1822, %v1840
    %v1843 = vpack.c.bf16 %v1842, %v1841
    %s1844 = scalar_lea.vmem %s10, 32
    %v1845 = vld [vmem:[%s1844] sm:$0xf]
    %v1846 = vld [vmem:[%s1844 + $0x4] sm:$0xf]
    %v1847 = vld [vmem:[%s1844 + $0x8] sm:$0xf]
    %v1848 = vld [vmem:[%s1844 + $0xc] sm:$0xf]
    %v1849 = vld [vmem:[%s1844 + $0x10] sm:$0xf]
    %v1850 = vld [vmem:[%s1844 + $0x14] sm:$0xf]
    %v1851 = vld [vmem:[%s1844 + $0x18] sm:$0xf]
    %v1852 = vld [vmem:[%s1844 + $0x1c] sm:$0xf]
    %s1853 = scalar_lea.vmem [#allocation10], 1
    %v1854 = vld [vmem:[%s1853] sm:$0x1]
    %v1856 = vlaneseq
    %v1857 = vshrl.u32 %v1856, 7
    %v1858 = vsub.s32 0, %v1857
    %v1859 = vrot.slane %v1854, %v1858
    %v1869 = vunpack.c.l.b16 %v1845
    %v1870 = vunpack.c.l.b16 %v1846
    %v1871 = vunpack.c.l.b16 %v1847
    %v1872 = vunpack.c.l.b16 %v1848
    %v1873 = vunpack.c.l.b16 %v1849
    %v1874 = vunpack.c.l.b16 %v1850
    %v1875 = vunpack.c.l.b16 %v1851
    %v1876 = vunpack.c.l.b16 %v1852
    %v1877 = vpack.c.b16 %v1870, %v1869
    %v1878 = vpack.c.b16 %v1872, %v1871
    %v1879 = vpack.c.b16 %v1874, %v1873
    %v1880 = vpack.c.b16 %v1876, %v1875
    %v1886 = vsel %vm985, %v1843, 0
    %1888 = vmatprep.subr.bf16.mxu0 0
    %1889 = vmatpush1.bf16.msra.mxu0 0
    %1890 = vmatprep.subr.bf16.mxu0 0
    %1891 = vmatpush1.bf16.msra.mxu0 0
    %1892 = vmatprep.subr.bf16.mxu0 0
    %1893 = vmatpush1.bf16.msra.mxu0 0
    %1894 = vmatprep.subr.bf16.mxu0 0
    %1895 = vmatpush1.bf16.msra.mxu0 0
    %1896 = vmatprep.subr.bf16.mxu0 0
    %1897 = vmatpush1.bf16.msra.mxu0 %v1880
    %1898 = vmatprep.subr.bf16.mxu0 0
    %1899 = vmatpush1.bf16.msra.mxu0 %v1879
    %1900 = vmatprep.subr.bf16.mxu0 0
    %1901 = vmatpush1.bf16.msra.mxu0 %v1878
    %1902 = vmatprep.subr.bf16.mxu0 0
    %1903 = vmatpush1.bf16.msra.mxu0 %v1877
    %1904 = vmatprep.subr.bf16.mxu0 0
    %1905 = vmatpush2.bf16.msra.mxu0 0
    %1906 = vmatprep.subr.bf16.mxu0 0
    %1907 = vmatpush2.bf16.msra.mxu0 0
    %1908 = vmatprep.subr.bf16.mxu0 0
    %1909 = vmatpush2.bf16.msra.mxu0 0
    %1910 = vmatprep.subr.bf16.mxu0 0
    %1911 = vmatpush2.bf16.msra.mxu0 0
    %1912 = vmatprep.subr.bf16.mxu0 0
    %1913 = vmatpush2.bf16.msra.mxu0 0
    %1914 = vmatprep.subr.bf16.mxu0 0
    %1915 = vmatpush2.bf16.msra.mxu0 0
    %1916 = vmatprep.subr.bf16.mxu0 0
    %1917 = vmatpush2.bf16.msra.mxu0 0
    %1918 = vmatprep.subr.bf16.mxu0 0
    %1919 = vmatpush2.bf16.msra.mxu0 0
    %1920 = vmatprep.mubr.bf16.mxu0 0
    %1921 = vmatmul.mubr.bf16.gmra.mxu0 %v1886
    %v1922 = vpop.f32.mrf.mxu0
    %v1923 = vadd.f32 %v1859, %v1922
    %v1924 = vpop.f32.mrf.mxu0
    %v1925 = vpop.f32.mrf.mxu0
    %v1926 = vadd.f32 %v1859, %v1925
    %v1927 = vpop.f32.mrf.mxu0
    %1928 = vdwg.mxu0
    %v1929 = vadd.f32 %v1753, %v1923
    %v1930 = vadd.f32 %v1754, %v1926
    %s1931 = scalar_lea.vmem [#allocation11], 1
    %v1932 = vld [vmem:[%s1931] sm:$0x1]
    %s1933 = scalar_lea.vmem %s13, 1
    %v1934 = vld [vmem:[%s1933] sm:$0x1]
    %v1935 = vsel %vm195, %v1929, 0.0
    %1936 = vadd.xlane.f32.xlu0 %v1935
    %v1937 = vpop.xlane.xlu0 %1936
    %v1938 = vsel %vm195, %v1930, 0.0
    %1939 = vadd.xlane.f32.xlu0 %v1938
    %v1940 = vpop.xlane.xlu0 %1939
    %v1941 = vmul.f32 %v1937, %v822
    %v1942 = vmul.f32 %v1940, %v822
    %v1943 = vsub.f32 %v1929, %v1941
    %v1944 = vsub.f32 %v1930, %v1942
    %v1945 = vmul.f32 %v1943, %v1943
    %v1946 = vmul.f32 %v1944, %v1944
    %v1947 = vsel %vm195, %v1945, 0.0
    %1948 = vadd.xlane.f32.xlu0 %v1947
    %v1949 = vpop.xlane.xlu0 %1948
    %v1950 = vsel %vm195, %v1946, 0.0
    %1951 = vadd.xlane.f32.xlu0 %v1950
    %v1952 = vpop.xlane.xlu0 %1951
    %v1953 = vmul.f32 %v1949, %v822
    %v1954 = vmul.f32 %v1952, %v822
    %v1955 = vadd.f32 %v1953, 1e-05
    %v1956 = vadd.f32 %v1954, 1e-05
    %v1957 = vrsqrt.pop %v1955
    %v1958 = vrsqrt.pop %v1956
    %v1959 = vmul.f32 %v1943, %v1957
    %v1960 = vmul.f32 %v1944, %v1958
    %v1962 = vlaneseq
    %v1963 = vshrl.u32 %v1962, 7
    %v1964 = vsub.s32 0, %v1963
    %v1965 = vrot.slane %v1932, %v1964
    %v1967 = vmul.f32 %v1959, %v1965
    %v1968 = vmul.f32 %v1960, %v1965
    %v1970 = vlaneseq
    %v1971 = vshrl.u32 %v1970, 7
    %v1972 = vsub.s32 0, %v1971
    %v1973 = vrot.slane %v1934, %v1972
    %v1975 = vadd.f32 %v1967, %v1973
    %v1976 = vadd.f32 %v1968, %v1973
    %v1977 = vlaneseq
    %v1978 = vshrl.u32 %v1977, 7
    %v1979 = vsub.s32 0, %v1978
    %v1980 = vrot.slane %v145, %v1979
    %1982 = vbcast.lane.b32.xlu0 %v1980, 256
    %v1983 = vpop.permute.xlu0 %1982
    %v1984 = vlaneseq
    %v1985 = vshrl.u32 %v1984, 7
    %v1986 = vsub.s32 1, %v1985
    %v1987 = vrot.slane %v145, %v1986
    %1989 = vbcast.lane.b32.xlu0 %v1987, 256
    %v1990 = vpop.permute.xlu0 %1989
    %v1991 = vmul.f32 %v1975, %v1983
    %v1992 = vmul.f32 %v1976, %v1990
    %v1993 = vsel %vm195, %v1991, 0.0
    %v1994 = vrot.slane %v1993, 4
    %v1995 = vadd.f32 %v1993, %v1994
    %v1996 = vrot.slane %v1995, 2
    %v1997 = vadd.f32 %v1995, %v1996
    %v1998 = vrot.slane %v1997, 1
    %v1999 = vadd.f32 %v1997, %v1998
    %v2000 = vsel %vm195, %v1992, 0.0
    %v2001 = vrot.slane %v2000, 4
    %v2002 = vadd.f32 %v2000, %v2001
    %v2003 = vrot.slane %v2002, 2
    %v2004 = vadd.f32 %v2002, %v2003
    %v2005 = vrot.slane %v2004, 1
    %v2006 = vadd.f32 %v2004, %v2005
    %v2007 = vld [vmem:[%s14] sm:$0x1]
    %v2008 = vld [vmem:[%s15] sm:$0x1]
    %vm2011 = vcmask 1041409
    %v2012 = vsel %vm2011, %v2006, %v1999
    %vm2014 = vcmask 254976
    %v2015 = vsel %vm2014, %v2012, 0.0
    %2016 = vadd.xlane.f32.xlu0 %v2015
    %v2017 = vpop.xlane.xlu0 %2016
    %v2018 = vmul.f32 %v2017, %v822
    %v2020 = vrot.slane %v2018, 1
    %v2023 = vsub.f32 %v1999, %v2018
    %v2024 = vsub.f32 %v2006, %v2020
    %v2025 = vmul.f32 %v2023, %v2023
    %v2026 = vmul.f32 %v2024, %v2024
    %v2029 = vrot.slane %v2026, 7
    %v2030 = vsel %vm2011, %v2029, %v2025
    %v2032 = vsel %vm2014, %v2030, 0.0
    %2033 = vadd.xlane.f32.xlu0 %v2032
    %v2034 = vpop.xlane.xlu0 %2033
    %v2035 = vmul.f32 %v2034, %v822
    %v2036 = vadd.f32 %v2035, 1e-05
    %v2037 = vrsqrt.pop %v2036
    %v2039 = vrot.slane %v2037, 1
    %v2042 = vmul.f32 %v2023, %v2037
    %v2043 = vmul.f32 %v2024, %v2039
    %v2045 = vlaneseq
    %v2046 = vshrl.u32 %v2045, 7
    %v2047 = vsub.s32 0, %v2046
    %v2048 = vrot.slane %v2007, %v2047
    %v2050 = vmul.f32 %v2042, %v2048
    %v2051 = vmul.f32 %v2043, %v2048
    %v2053 = vlaneseq
    %v2054 = vshrl.u32 %v2053, 7
    %v2055 = vsub.s32 0, %v2054
    %v2056 = vrot.slane %v2008, %v2055
    %v2058 = vadd.f32 %v2050, %v2056
    %v2059 = vadd.f32 %v2051, %v2056
    %v2060 = vld [vmem:[%s16] sm:$0xff]
    %v2061 = vld [vmem:[%s16 + $0x8] sm:$0xff]
    %v2062 = vld [vmem:[%s16 + $0x10] sm:$0xff]
    %v2063 = vld [vmem:[%s16 + $0x18] sm:$0xff]
    %v2064 = vld [vmem:[%s17] sm:$0x1]
    %v2066 = vlaneseq
    %v2067 = vshrl.u32 %v2066, 7
    %v2068 = vsub.s32 0, %v2067
    %v2069 = vrot.slane %v2064, %v2068
    %v2073 = vrot.slane %v2059, 7
    %v2074 = vsel %vm2011, %v2073, %v2058
    %v2075 = vsel %vm195, %v2074, 0
    %2077 = vmatprep.subr.mxu0 0.0
    %2078 = vmatpush1.msra.mxu0 0.0
    %2079 = vmatprep.subr.mxu0 0.0
    %2080 = vmatpush1.msra.mxu0 0.0
    %2081 = vmatprep.subr.mxu0 0.0
    %2082 = vmatpush1.msra.mxu0 0.0
    %2083 = vmatprep.subr.mxu0 0.0
    %2084 = vmatpush1.msra.mxu0 0.0
    %2085 = vmatprep.subr.mxu0 0.0
    %2086 = vmatpush1.msra.mxu0 0.0
    %2087 = vmatprep.subr.mxu0 0.0
    %2088 = vmatpush1.msra.mxu0 0.0
    %2089 = vmatprep.subr.mxu0 0.0
    %2090 = vmatpush1.msra.mxu0 0.0
    %2091 = vmatprep.subr.mxu0 0.0
    %2092 = vmatpush1.msra.mxu0 0.0
    %2093 = vmatprep.subr.mxu0 0.0
    %2094 = vmatpush1.msra.mxu0 0.0
    %2095 = vmatprep.subr.mxu0 0.0
    %2096 = vmatpush1.msra.mxu0 0.0
    %2097 = vmatprep.subr.mxu0 0.0
    %2098 = vmatpush1.msra.mxu0 0.0
    %2099 = vmatprep.subr.mxu0 0.0
    %2100 = vmatpush1.msra.mxu0 0.0
    %2101 = vmatprep.subr.mxu0 0.0
    %2102 = vmatpush1.msra.mxu0 %v2063
    %2103 = vmatprep.subr.mxu0 0.0
    %2104 = vmatpush1.msra.mxu0 %v2062
    %2105 = vmatprep.subr.mxu0 0.0
    %2106 = vmatpush1.msra.mxu0 %v2061
    %2107 = vmatprep.subr.mxu0 0.0
    %2108 = vmatpush1.msra.mxu0 %v2060
    %2109 = vmatprep.subr.mxu0 0.0
    %2110 = vmatpush2.msra.mxu0 0.0
    %2111 = vmatprep.subr.mxu0 0.0
    %2112 = vmatpush2.msra.mxu0 0.0
    %2113 = vmatprep.subr.mxu0 0.0
    %2114 = vmatpush2.msra.mxu0 0.0
    %2115 = vmatprep.subr.mxu0 0.0
    %2116 = vmatpush2.msra.mxu0 0.0
    %2117 = vmatprep.subr.mxu0 0.0
    %2118 = vmatpush2.msra.mxu0 0.0
    %2119 = vmatprep.subr.mxu0 0.0
    %2120 = vmatpush2.msra.mxu0 0.0
    %2121 = vmatprep.subr.mxu0 0.0
    %2122 = vmatpush2.msra.mxu0 0.0
    %2123 = vmatprep.subr.mxu0 0.0
    %2124 = vmatpush2.msra.mxu0 0.0
    %2125 = vmatprep.subr.mxu0 0.0
    %2126 = vmatpush2.msra.mxu0 0.0
    %2127 = vmatprep.subr.mxu0 0.0
    %2128 = vmatpush2.msra.mxu0 0.0
    %2129 = vmatprep.subr.mxu0 0.0
    %2130 = vmatpush2.msra.mxu0 0.0
    %2131 = vmatprep.subr.mxu0 0.0
    %2132 = vmatpush2.msra.mxu0 0.0
    %2133 = vmatprep.subr.mxu0 0.0
    %2134 = vmatpush2.msra.mxu0 0.0
    %2135 = vmatprep.subr.mxu0 0.0
    %2136 = vmatpush2.msra.mxu0 0.0
    %2137 = vmatprep.subr.mxu0 0.0
    %2138 = vmatpush2.msra.mxu0 0.0
    %2139 = vmatprep.subr.mxu0 0.0
    %2140 = vmatpush2.msra.mxu0 0.0
    %2141 = vmatprep.mubr.f32.mxu0 0.0
    %2142 = vmatmul.mubr.f32.gmra.mxu0 %v2075
    %v2143 = vpop.f32.mrf.mxu0
    %v2144 = vadd.f32 %v2069, %v2143
    %v2145 = vpop.f32.mrf.mxu0
    %2146 = vdwg.mxu0
    %vm2147 = vcmask 17408
    %2148 = vst.msk [vmem:[#allocation13] sm:$0x3] %vm2147, %v2144
    // Predicated region
    $region98: #{tpu_custom_call.1} parent=1 // pred_check
      _
    $region99: #{tpu_custom_call.1} parent=1 // pred_check_branch
      %2150 = sbr.rel (0) target = $region101
    $region100: #{tpu_custom_call.1} parent=1 // pred_region
      %s2152 = ssub.s32 32, 32
      %2153 = vsyncadd [#allocation4], %s2152
      %s2155 = sshll.u32 [#allocation13], 4
      %s2156 = int_to_ptr.vmem [resolvable:$true] %s2155
      %2158 = dma.vmem_to_hbm [thread:$0]  %s2156, 32, %s18, [#allocation4]
    $region101: #{tpu_custom_call.1} parent=1 // pred_fallthru
      _
    // Predicated region
    $region102: #{tpu_custom_call.1} parent=1 // pred_check
      _
    $region103: #{tpu_custom_call.1} parent=1 // pred_check_branch
      %2160 = sbr.rel (0) target = $region105
    $region104: #{tpu_custom_call.1} parent=1 // pred_region
      %2161 = dma.done [#allocation4], 32
    $region105: #{tpu_custom_call.1} parent=1 // pred_fallthru
      _
    %2162 = vsyncpa [#allocation3], 1
    %2163 = vsyncpa [#allocation6], 1
    %2164 = vsyncpa [#allocation9], 1
    %2165 = vsyncpa [#allocation12], 1
    %2166 = vsyncpa [#allocation4], 1

</llo_original>
